<compile_context>
chip_gen: v5e
topology: v5e:2x2
jax: 0.10.0
libtpu: 0.0.40
codegen_flags: <defaults>
</compile_context>

<pallas_src>
import functools

import jax
import jax.numpy as jnp
import numpy as np
from jax.experimental import pallas as pl
from jax.experimental.pallas import tpu as pltpu


# -----------------------------------------------------------------------------
# Fused kernel: fc + Viterbi forward recursion + back-pointer walk
# -----------------------------------------------------------------------------
def viterbi_fused_kernel(x_ref, w_ref, b_ref, mask_ref, trans_ref,
                         maxsc_ref, path_ref, *, start_idx, stop_idx):
    """Per batch tile of size TB.

    x_ref:     (TB, L, D)  inputs (batch-major, as given)
    w_ref:     (D, C)      fc weight, pre-transposed wrapper-side
    b_ref:     (1, C)      fc bias
    mask_ref:  (TB, 1, L)  validity mask (1.0 where t < len[b])
    trans_ref: (C, C)      CRF transitions: trans[i, j] = score(j -> i)
    maxsc_ref: (TB, 1, C)  final max_score (incl. stop transition)
    path_ref:  (TB, 1, L)  decoded best paths (0-padded past len)
    """
    TB, L, D = x_ref.shape
    C = w_ref.shape[1]

    # --- fc (Dropout = eval identity): one MXU matmul for the whole tile,
    #     hoisted out of the serial recursion. ---------------------------------
    x2d = x_ref[...].reshape(TB * L, D)
    emit = (jnp.dot(x2d, w_ref[...], preferred_element_type=jnp.float32)
            + b_ref[...])                                        # (TB*L, C)
    # Stage emissions time-major once; per-step access is then a free
    # first-axis index instead of a strided sublane gather every step.
    emit_tm = jnp.transpose(emit.reshape(TB, L, C), (1, 0, 2))   # (L, TB, C)

    mask = mask_ref[...].reshape(TB, L)                          # (TB, L) f32
    lens = jnp.sum(mask, axis=-1, keepdims=True).astype(jnp.int32)  # (TB, 1)

    trans = trans_ref[...]                                       # (C, C)
    col = jax.lax.broadcasted_iota(jnp.int32, (TB, C), 1)
    lane = jax.lax.broadcasted_iota(jnp.int32, (TB, C, C), 2)

    max_score = jnp.where(col == start_idx,
                          jnp.float32(0.0), jnp.float32(-100000.0))  # (TB, C)

    # --- Viterbi forward recursion (statically unrolled; L is compile-time) ---
    bps = []
    for t in range(L):
        # scores[b, i, j] = max_score[b, j] + trans[i, j]
        scores = max_score[:, None, :] + trans[None, :, :]       # (TB, C, C)
        best_v = jnp.max(scores, axis=-1)                        # (TB, C)
        # back-pointer = first index attaining the row max (iota-min trick)
        bp = jnp.min(jnp.where(scores == best_v[:, :, None], lane, C),
                     axis=-1).astype(jnp.int32)                  # (TB, C)
        bps.append(bp)
        new_score = best_v + emit_tm[t]                          # (TB, C)
        valid = mask[:, t:t + 1] > 0.5                           # (TB, 1)
        max_score = jnp.where(valid, new_score, max_score)

    # stop transition + final score output
    max_score = max_score + trans[stop_idx:stop_idx + 1, :]
    maxsc_ref[...] = max_score[:, None, :]                       # (TB, 1, C)

    # final best tag (first-argmax via iota-min)
    max_v = jnp.max(max_score, axis=-1, keepdims=True)
    tag = jnp.min(jnp.where(max_score == max_v, col, C),
                  axis=-1, keepdims=True).astype(jnp.int32)      # (TB, 1)

    # --- back-pointer walk, fused & vectorized over the batch tile -----------
    lane_L = jax.lax.broadcasted_iota(jnp.int32, (TB, L), 1)
    path = jnp.zeros((TB, L), jnp.int32)
    for t in range(L - 1, -1, -1):
        if t < L - 1:
            # gather tol[t+1, b, tag[b]] with a one-hot masked sum (no scalars)
            looked = jnp.sum(jnp.where(col == tag, bps[t + 1], 0),
                             axis=-1, keepdims=True)             # (TB, 1)
            tag = jnp.where(lens - 2 >= t, looked, tag)
        path = jnp.where((lane_L == t) & (lens > t), tag, path)
    path_ref[...] = path[:, None, :]                             # (TB, 1, L)


# -----------------------------------------------------------------------------
# Wrapper
# -----------------------------------------------------------------------------
def output_trans_forward(params, x, mk, *, num_class_total, start_idx, stop_idx,
                         batch_tile=1):
    """Mirrors outputTrans.forward(x, mk) -> (max_score, best_paths)."""
    B, L, D = x.shape
    C = num_class_total
    TB = batch_tile
    assert B % TB == 0, "batch must be divisible by the batch tile"

    x_f32 = x.astype(jnp.float32)                                 # (B, L, D)
    mk3 = mk.astype(jnp.float32).reshape(B, 1, L)                 # (B, 1, L)
    w_t = jnp.transpose(params["fc_w"]).astype(jnp.float32)       # (D, C)
    bias = params["fc_b"].reshape(1, C).astype(jnp.float32)       # (1, C)
    trans = params["transitions"].astype(jnp.float32)             # (C, C)

    kernel = functools.partial(viterbi_fused_kernel,
                               start_idx=start_idx, stop_idx=stop_idx)

    maxsc3, path3 = pl.pallas_call(
        kernel,
        grid=(B // TB,),
        in_specs=[
            pl.BlockSpec((TB, L, D), lambda i: (i, 0, 0)),
            pl.BlockSpec((D, C), lambda i: (0, 0)),
            pl.BlockSpec((1, C), lambda i: (0, 0)),
            pl.BlockSpec((TB, 1, L), lambda i: (i, 0, 0)),
            pl.BlockSpec((C, C), lambda i: (0, 0)),
        ],
        out_specs=(
            pl.BlockSpec((TB, 1, C), lambda i: (i, 0, 0)),
            pl.BlockSpec((TB, 1, L), lambda i: (i, 0, 0)),
        ),
        out_shape=(
            jax.ShapeDtypeStruct((B, 1, C), jnp.float32),
            jax.ShapeDtypeStruct((B, 1, L), jnp.int32),
        ),
        compiler_params=pltpu.CompilerParams(
            dimension_semantics=("parallel",)),
    )(x_f32, w_t, bias, mk3, trans)

    return maxsc3.reshape(B, C), path3.reshape(B, L)


# -----------------------------------------------------------------------------
# NumPy float64 reference (mirrors the PyTorch module exactly)
# -----------------------------------------------------------------------------
def _forward_ref_np(x, mk, w, b, trans, start_idx, stop_idx):
    x = np.asarray(x, np.float64); mk = np.asarray(mk, np.float64)
    w = np.asarray(w, np.float64); b = np.asarray(b, np.float64)
    trans = np.asarray(trans, np.float64)
    B, L, _ = x.shape
    C = w.shape[0]
    emit = x @ w.T + b                                   # (B, L, C)
    max_score = np.full((B, C), -100000.0)
    max_score[:, start_idx] = 0.0
    tol = np.zeros((B, L, C), np.int64)
    for t in range(L):
        scores = max_score[:, None, :] + trans[None, :, :]
        tol[:, t, :] = scores.argmax(-1)
        best = scores.max(-1) + emit[:, t, :]
        m = mk[:, t][:, None]
        max_score = best * m + max_score * (1.0 - m)
    max_score = max_score + trans[stop_idx]
    best_tags = max_score.argmax(-1)
    lens = mk.sum(-1).astype(np.int64)
    paths = np.zeros((B, L), np.int32)
    for bi in range(B):
        ln = int(lens[bi]); tag = int(best_tags[bi])
        if ln > 0:
            paths[bi, ln - 1] = tag
            for t in range(ln - 1, 0, -1):
                tag = int(tol[bi, t, tag])
                paths[bi, t - 1] = tag
    return max_score, paths, emit


def _path_score_np(emit_b, trans, path_b, ln, start_idx, stop_idx):
    trans = np.asarray(trans, np.float64)
    s, prev = 0.0, start_idx
    for t in range(int(ln)):
        cur = int(path_b[t])
        s += float(emit_b[t, cur]) + float(trans[cur, prev])
        prev = cur
    return s + float(trans[stop_idx, prev])


# -----------------------------------------------------------------------------
# main
# -----------------------------------------------------------------------------
if __name__ == "__main__":
    IN_DIM, NUM_CLASS_ARG = 32, 6
    B, L = 2, 8
    C = NUM_CLASS_ARG + 2                   # + start + stop
    START, STOP = C - 2, C - 1

    key = jax.random.PRNGKey(0)
    k1, k2, k3, k4 = jax.random.split(key, 4)
    fc_w = 0.2 * jax.random.normal(k1, (C, IN_DIM), jnp.float32)
    fc_b = 0.2 * jax.random.normal(k2, (C,), jnp.float32)
    trans = jax.random.normal(k3, (C, C), jnp.float32)
    trans = trans.at[START, :].set(-100000.0)
    trans = trans.at[:, STOP].set(-100000.0)
    params = {"fc_w": fc_w, "fc_b": fc_b, "transitions": trans}

    x = jax.random.normal(k4, (B, L, IN_DIM), jnp.float32)
    lens = jnp.array([8, 5], jnp.int32)
    mk = (jnp.arange(L)[None, :] < lens[:, None]).astype(jnp.float32)

    fwd = jax.jit(functools.partial(output_trans_forward,
                                    num_class_total=C,
                                    start_idx=START, stop_idx=STOP,
                                    batch_tile=1))
    max_score, best_paths = fwd(params, x, mk)
    jax.block_until_ready((max_score, best_paths))

    # verify against a float64 NumPy reference of the PyTorch module
    ref_score, ref_paths, emit64 = _forward_ref_np(x, mk, fc_w, fc_b, trans,
                                                   START, STOP)
    ks = np.asarray(max_score); kp = np.asarray(best_paths)
    assert ks.shape == (B, C) and kp.shape == (B, L)
    assert np.allclose(ks, ref_score, atol=5e-2), "max_score mismatch"
    lens_np = np.asarray(mk).sum(-1).astype(np.int64)
    if not np.array_equal(kp, ref_paths):
        # tolerate benign argmax tie-flips from matmul rounding: the decoded
        # path must still be optimal (same score) and correctly zero-padded.
        for bi in range(B):
            assert np.all(kp[bi, int(lens_np[bi]):] == 0), "padding mismatch"
            s_k = _path_score_np(emit64[bi], trans, kp[bi], lens_np[bi], START, STOP)
            s_r = _path_score_np(emit64[bi], trans, ref_paths[bi], lens_np[bi], START, STOP)
            assert abs(s_k - s_r) <= 5e-2, "decoded path is not optimal"

    print("KERNEL_OK")
</pallas_src>

<mosaic_0001>
module attributes {stable_mosaic.version = 11 : i64} {
  func.func @viterbi_fused_kernel(%arg0: i32, %arg1: memref<1x8x32xf32, #tpu.memory_space<vmem>>, %arg2: memref<32x8xf32, #tpu.memory_space<vmem>>, %arg3: memref<1x8xf32, #tpu.memory_space<vmem>>, %arg4: memref<1x1x8xf32, #tpu.memory_space<vmem>>, %arg5: memref<8x8xf32, #tpu.memory_space<vmem>>, %arg6: memref<1x1x8xf32, #tpu.memory_space<vmem>>, %arg7: memref<1x1x8xi32, #tpu.memory_space<vmem>>) attributes {dimension_semantics = [#tpu.dimension_semantics<parallel>], iteration_bounds = array<i64: 2>, scalar_prefetch = 0 : i64, scratch_operands = 0 : i64, tpu.core_type = #tpu.core_type<tc>, window_params = [{transform_indices = @transform_0, window_bounds = array<i64: 1, 8, 32>}, {pipeline_mode = #tpu.pipeline_mode<synchronous>, transform_indices = @transform_1, window_bounds = array<i64: 32, 8>}, {pipeline_mode = #tpu.pipeline_mode<synchronous>, transform_indices = @transform_2, window_bounds = array<i64: 1, 8>}, {transform_indices = @transform_3, window_bounds = array<i64: 1, 1, 8>}, {pipeline_mode = #tpu.pipeline_mode<synchronous>, transform_indices = @transform_4, window_bounds = array<i64: 8, 8>}, {transform_indices = @transform_5, window_bounds = array<i64: 1, 1, 8>}, {transform_indices = @transform_6, window_bounds = array<i64: 1, 1, 8>}]} {
    %c0 = arith.constant 0 : index
    %c0_0 = arith.constant 0 : index
    %c0_1 = arith.constant 0 : index
    %0 = vector.load %arg1[%c0, %c0_0, %c0_1] : memref<1x8x32xf32, #tpu.memory_space<vmem>>, vector<1x8x32xf32>
    %1 = vector.shape_cast %0 : vector<1x8x32xf32> to vector<8x32xf32>
    %c0_2 = arith.constant 0 : index
    %c0_3 = arith.constant 0 : index
    %2 = vector.load %arg2[%c0_2, %c0_3] : memref<32x8xf32, #tpu.memory_space<vmem>>, vector<32x8xf32>
    %cst = arith.constant dense<0.000000e+00> : vector<8x8xf32>
    %3 = tpu.matmul %1, %2, %cst {dimension_numbers = #tpu.dot_dimension_numbers<[1], [0], [0], [1], [0, 0, 1, 1], [], []>} : vector<8x32xf32>, vector<32x8xf32>, vector<8x8xf32> -> vector<8x8xf32>
    %c0_4 = arith.constant 0 : index
    %c0_5 = arith.constant 0 : index
    %4 = vector.load %arg3[%c0_4, %c0_5] : memref<1x8xf32, #tpu.memory_space<vmem>>, vector<1x8xf32>
    %5 = vector.broadcast %4 : vector<1x8xf32> to vector<8x8xf32>
    %6 = arith.addf %3, %5 : vector<8x8xf32>
    %7 = vector.shape_cast %6 : vector<8x8xf32> to vector<1x8x8xf32>
    %8 = tpu.transpose %7, [1, 0, 2] : vector<1x8x8xf32> -> vector<8x1x8xf32>
    %c0_6 = arith.constant 0 : index
    %c0_7 = arith.constant 0 : index
    %c0_8 = arith.constant 0 : index
    %9 = vector.load %arg4[%c0_6, %c0_7, %c0_8] : memref<1x1x8xf32, #tpu.memory_space<vmem>>, vector<1x1x8xf32>
    %10 = vector.shape_cast %9 : vector<1x1x8xf32> to vector<1x8xf32>
    %cst_9 = arith.constant dense<0.000000e+00> : vector<1xf32>
    %11 = vector.multi_reduction <add>, %10, %cst_9 [1] : vector<1x8xf32> to vector<1xf32>
    %12 = vector.shape_cast %11 : vector<1xf32> to vector<1x1xf32>
    %13 = arith.fptosi %12 : vector<1x1xf32> to vector<1x1xi32>
    %c0_10 = arith.constant 0 : index
    %c0_11 = arith.constant 0 : index
    %14 = vector.load %arg5[%c0_10, %c0_11] : memref<8x8xf32, #tpu.memory_space<vmem>>, vector<8x8xf32>
    %15 = tpu.iota {dimensions = array<i32: 1>} : vector<1x8xi32>
    %16 = tpu.iota {dimensions = array<i32: 2>} : vector<1x8x8xi32>
    %c6_i32 = arith.constant 6 : i32
    %17 = vector.broadcast %c6_i32 : i32 to vector<1x8xi32>
    %18 = arith.cmpi eq, %15, %17 : vector<1x8xi32>
    %cst_12 = arith.constant 0.000000e+00 : f32
    %cst_13 = arith.constant -1.000000e+05 : f32
    %19 = vector.broadcast %cst_12 : f32 to vector<1x8xf32>
    %20 = vector.broadcast %cst_13 : f32 to vector<1x8xf32>
    %21 = arith.select %18, %19, %20 : vector<1x8xi1>, vector<1x8xf32>
    %22 = vector.shape_cast %21 : vector<1x8xf32> to vector<1x1x8xf32>
    %23 = vector.shape_cast %14 : vector<8x8xf32> to vector<1x8x8xf32>
    %24 = vector.broadcast %22 : vector<1x1x8xf32> to vector<1x8x8xf32>
    %25 = arith.addf %24, %23 : vector<1x8x8xf32>
    %cst_14 = arith.constant dense<0xFF800000> : vector<1x8xf32>
    %26 = vector.multi_reduction <maximumf>, %25, %cst_14 [2] : vector<1x8x8xf32> to vector<1x8xf32>
    %27 = vector.extract_strided_slice %8 {offsets = [0, 0, 0], sizes = [1, 1, 8], strides = [1, 1, 1]} : vector<8x1x8xf32> to vector<1x1x8xf32>
    %28 = vector.shape_cast %27 : vector<1x1x8xf32> to vector<1x8xf32>
    %29 = arith.addf %26, %28 : vector<1x8xf32>
    %30 = vector.extract_strided_slice %10 {offsets = [0, 0], sizes = [1, 1], strides = [1, 1]} : vector<1x8xf32> to vector<1x1xf32>
    %cst_15 = arith.constant 5.000000e-01 : f32
    %31 = vector.broadcast %cst_15 : f32 to vector<1x1xf32>
    %32 = arith.cmpf ogt, %30, %31 : vector<1x1xf32>
    %33 = vector.shape_cast %32 : vector<1x1xi1> to vector<1x1xi1>
    %34 = vector.broadcast %33 : vector<1x1xi1> to vector<1x8xi1>
    %35 = arith.select %34, %29, %21 : vector<1x8xi1>, vector<1x8xf32>
    %36 = vector.shape_cast %35 : vector<1x8xf32> to vector<1x1x8xf32>
    %37 = vector.shape_cast %14 : vector<8x8xf32> to vector<1x8x8xf32>
    %38 = vector.broadcast %36 : vector<1x1x8xf32> to vector<1x8x8xf32>
    %39 = arith.addf %38, %37 : vector<1x8x8xf32>
    %cst_16 = arith.constant dense<0xFF800000> : vector<1x8xf32>
    %40 = vector.multi_reduction <maximumf>, %39, %cst_16 [2] : vector<1x8x8xf32> to vector<1x8xf32>
    %41 = vector.shape_cast %40 : vector<1x8xf32> to vector<1x8x1xf32>
    %42 = vector.broadcast %41 : vector<1x8x1xf32> to vector<1x8x8xf32>
    %43 = arith.cmpf oeq, %39, %42 : vector<1x8x8xf32>
    %c8_i32 = arith.constant 8 : i32
    %44 = vector.broadcast %c8_i32 : i32 to vector<1x8x8xi32>
    %45 = arith.select %43, %16, %44 : vector<1x8x8xi1>, vector<1x8x8xi32>
    %cst_17 = arith.constant dense<2147483647> : vector<1x8xi32>
    %46 = vector.multi_reduction <minsi>, %45, %cst_17 [2] : vector<1x8x8xi32> to vector<1x8xi32>
    %47 = vector.extract_strided_slice %8 {offsets = [1, 0, 0], sizes = [1, 1, 8], strides = [1, 1, 1]} : vector<8x1x8xf32> to vector<1x1x8xf32>
    %48 = vector.shape_cast %47 : vector<1x1x8xf32> to vector<1x8xf32>
    %49 = arith.addf %40, %48 : vector<1x8xf32>
    %50 = vector.extract_strided_slice %10 {offsets = [0, 1], sizes = [1, 1], strides = [1, 1]} : vector<1x8xf32> to vector<1x1xf32>
    %cst_18 = arith.constant 5.000000e-01 : f32
    %51 = vector.broadcast %cst_18 : f32 to vector<1x1xf32>
    %52 = arith.cmpf ogt, %50, %51 : vector<1x1xf32>
    %53 = vector.shape_cast %52 : vector<1x1xi1> to vector<1x1xi1>
    %54 = vector.broadcast %53 : vector<1x1xi1> to vector<1x8xi1>
    %55 = arith.select %54, %49, %35 : vector<1x8xi1>, vector<1x8xf32>
    %56 = vector.shape_cast %55 : vector<1x8xf32> to vector<1x1x8xf32>
    %57 = vector.shape_cast %14 : vector<8x8xf32> to vector<1x8x8xf32>
    %58 = vector.broadcast %56 : vector<1x1x8xf32> to vector<1x8x8xf32>
    %59 = arith.addf %58, %57 : vector<1x8x8xf32>
    %cst_19 = arith.constant dense<0xFF800000> : vector<1x8xf32>
    %60 = vector.multi_reduction <maximumf>, %59, %cst_19 [2] : vector<1x8x8xf32> to vector<1x8xf32>
    %61 = vector.shape_cast %60 : vector<1x8xf32> to vector<1x8x1xf32>
    %62 = vector.broadcast %61 : vector<1x8x1xf32> to vector<1x8x8xf32>
    %63 = arith.cmpf oeq, %59, %62 : vector<1x8x8xf32>
    %c8_i32_20 = arith.constant 8 : i32
    %64 = vector.broadcast %c8_i32_20 : i32 to vector<1x8x8xi32>
    %65 = arith.select %63, %16, %64 : vector<1x8x8xi1>, vector<1x8x8xi32>
    %cst_21 = arith.constant dense<2147483647> : vector<1x8xi32>
    %66 = vector.multi_reduction <minsi>, %65, %cst_21 [2] : vector<1x8x8xi32> to vector<1x8xi32>
    %67 = vector.extract_strided_slice %8 {offsets = [2, 0, 0], sizes = [1, 1, 8], strides = [1, 1, 1]} : vector<8x1x8xf32> to vector<1x1x8xf32>
    %68 = vector.shape_cast %67 : vector<1x1x8xf32> to vector<1x8xf32>
    %69 = arith.addf %60, %68 : vector<1x8xf32>
    %70 = vector.extract_strided_slice %10 {offsets = [0, 2], sizes = [1, 1], strides = [1, 1]} : vector<1x8xf32> to vector<1x1xf32>
    %cst_22 = arith.constant 5.000000e-01 : f32
    %71 = vector.broadcast %cst_22 : f32 to vector<1x1xf32>
    %72 = arith.cmpf ogt, %70, %71 : vector<1x1xf32>
    %73 = vector.shape_cast %72 : vector<1x1xi1> to vector<1x1xi1>
    %74 = vector.broadcast %73 : vector<1x1xi1> to vector<1x8xi1>
    %75 = arith.select %74, %69, %55 : vector<1x8xi1>, vector<1x8xf32>
    %76 = vector.shape_cast %75 : vector<1x8xf32> to vector<1x1x8xf32>
    %77 = vector.shape_cast %14 : vector<8x8xf32> to vector<1x8x8xf32>
    %78 = vector.broadcast %76 : vector<1x1x8xf32> to vector<1x8x8xf32>
    %79 = arith.addf %78, %77 : vector<1x8x8xf32>
    %cst_23 = arith.constant dense<0xFF800000> : vector<1x8xf32>
    %80 = vector.multi_reduction <maximumf>, %79, %cst_23 [2] : vector<1x8x8xf32> to vector<1x8xf32>
    %81 = vector.shape_cast %80 : vector<1x8xf32> to vector<1x8x1xf32>
    %82 = vector.broadcast %81 : vector<1x8x1xf32> to vector<1x8x8xf32>
    %83 = arith.cmpf oeq, %79, %82 : vector<1x8x8xf32>
    %c8_i32_24 = arith.constant 8 : i32
    %84 = vector.broadcast %c8_i32_24 : i32 to vector<1x8x8xi32>
    %85 = arith.select %83, %16, %84 : vector<1x8x8xi1>, vector<1x8x8xi32>
    %cst_25 = arith.constant dense<2147483647> : vector<1x8xi32>
    %86 = vector.multi_reduction <minsi>, %85, %cst_25 [2] : vector<1x8x8xi32> to vector<1x8xi32>
    %87 = vector.extract_strided_slice %8 {offsets = [3, 0, 0], sizes = [1, 1, 8], strides = [1, 1, 1]} : vector<8x1x8xf32> to vector<1x1x8xf32>
    %88 = vector.shape_cast %87 : vector<1x1x8xf32> to vector<1x8xf32>
    %89 = arith.addf %80, %88 : vector<1x8xf32>
    %90 = vector.extract_strided_slice %10 {offsets = [0, 3], sizes = [1, 1], strides = [1, 1]} : vector<1x8xf32> to vector<1x1xf32>
    %cst_26 = arith.constant 5.000000e-01 : f32
    %91 = vector.broadcast %cst_26 : f32 to vector<1x1xf32>
    %92 = arith.cmpf ogt, %90, %91 : vector<1x1xf32>
    %93 = vector.shape_cast %92 : vector<1x1xi1> to vector<1x1xi1>
    %94 = vector.broadcast %93 : vector<1x1xi1> to vector<1x8xi1>
    %95 = arith.select %94, %89, %75 : vector<1x8xi1>, vector<1x8xf32>
    %96 = vector.shape_cast %95 : vector<1x8xf32> to vector<1x1x8xf32>
    %97 = vector.shape_cast %14 : vector<8x8xf32> to vector<1x8x8xf32>
    %98 = vector.broadcast %96 : vector<1x1x8xf32> to vector<1x8x8xf32>
    %99 = arith.addf %98, %97 : vector<1x8x8xf32>
    %cst_27 = arith.constant dense<0xFF800000> : vector<1x8xf32>
    %100 = vector.multi_reduction <maximumf>, %99, %cst_27 [2] : vector<1x8x8xf32> to vector<1x8xf32>
    %101 = vector.shape_cast %100 : vector<1x8xf32> to vector<1x8x1xf32>
    %102 = vector.broadcast %101 : vector<1x8x1xf32> to vector<1x8x8xf32>
    %103 = arith.cmpf oeq, %99, %102 : vector<1x8x8xf32>
    %c8_i32_28 = arith.constant 8 : i32
    %104 = vector.broadcast %c8_i32_28 : i32 to vector<1x8x8xi32>
    %105 = arith.select %103, %16, %104 : vector<1x8x8xi1>, vector<1x8x8xi32>
    %cst_29 = arith.constant dense<2147483647> : vector<1x8xi32>
    %106 = vector.multi_reduction <minsi>, %105, %cst_29 [2] : vector<1x8x8xi32> to vector<1x8xi32>
    %107 = vector.extract_strided_slice %8 {offsets = [4, 0, 0], sizes = [1, 1, 8], strides = [1, 1, 1]} : vector<8x1x8xf32> to vector<1x1x8xf32>
    %108 = vector.shape_cast %107 : vector<1x1x8xf32> to vector<1x8xf32>
    %109 = arith.addf %100, %108 : vector<1x8xf32>
    %110 = vector.extract_strided_slice %10 {offsets = [0, 4], sizes = [1, 1], strides = [1, 1]} : vector<1x8xf32> to vector<1x1xf32>
    %cst_30 = arith.constant 5.000000e-01 : f32
    %111 = vector.broadcast %cst_30 : f32 to vector<1x1xf32>
    %112 = arith.cmpf ogt, %110, %111 : vector<1x1xf32>
    %113 = vector.shape_cast %112 : vector<1x1xi1> to vector<1x1xi1>
    %114 = vector.broadcast %113 : vector<1x1xi1> to vector<1x8xi1>
    %115 = arith.select %114, %109, %95 : vector<1x8xi1>, vector<1x8xf32>
    %116 = vector.shape_cast %115 : vector<1x8xf32> to vector<1x1x8xf32>
    %117 = vector.shape_cast %14 : vector<8x8xf32> to vector<1x8x8xf32>
    %118 = vector.broadcast %116 : vector<1x1x8xf32> to vector<1x8x8xf32>
    %119 = arith.addf %118, %117 : vector<1x8x8xf32>
    %cst_31 = arith.constant dense<0xFF800000> : vector<1x8xf32>
    %120 = vector.multi_reduction <maximumf>, %119, %cst_31 [2] : vector<1x8x8xf32> to vector<1x8xf32>
    %121 = vector.shape_cast %120 : vector<1x8xf32> to vector<1x8x1xf32>
    %122 = vector.broadcast %121 : vector<1x8x1xf32> to vector<1x8x8xf32>
    %123 = arith.cmpf oeq, %119, %122 : vector<1x8x8xf32>
    %c8_i32_32 = arith.constant 8 : i32
    %124 = vector.broadcast %c8_i32_32 : i32 to vector<1x8x8xi32>
    %125 = arith.select %123, %16, %124 : vector<1x8x8xi1>, vector<1x8x8xi32>
    %cst_33 = arith.constant dense<2147483647> : vector<1x8xi32>
    %126 = vector.multi_reduction <minsi>, %125, %cst_33 [2] : vector<1x8x8xi32> to vector<1x8xi32>
    %127 = vector.extract_strided_slice %8 {offsets = [5, 0, 0], sizes = [1, 1, 8], strides = [1, 1, 1]} : vector<8x1x8xf32> to vector<1x1x8xf32>
    %128 = vector.shape_cast %127 : vector<1x1x8xf32> to vector<1x8xf32>
    %129 = arith.addf %120, %128 : vector<1x8xf32>
    %130 = vector.extract_strided_slice %10 {offsets = [0, 5], sizes = [1, 1], strides = [1, 1]} : vector<1x8xf32> to vector<1x1xf32>
    %cst_34 = arith.constant 5.000000e-01 : f32
    %131 = vector.broadcast %cst_34 : f32 to vector<1x1xf32>
    %132 = arith.cmpf ogt, %130, %131 : vector<1x1xf32>
    %133 = vector.shape_cast %132 : vector<1x1xi1> to vector<1x1xi1>
    %134 = vector.broadcast %133 : vector<1x1xi1> to vector<1x8xi1>
    %135 = arith.select %134, %129, %115 : vector<1x8xi1>, vector<1x8xf32>
    %136 = vector.shape_cast %135 : vector<1x8xf32> to vector<1x1x8xf32>
    %137 = vector.shape_cast %14 : vector<8x8xf32> to vector<1x8x8xf32>
    %138 = vector.broadcast %136 : vector<1x1x8xf32> to vector<1x8x8xf32>
    %139 = arith.addf %138, %137 : vector<1x8x8xf32>
    %cst_35 = arith.constant dense<0xFF800000> : vector<1x8xf32>
    %140 = vector.multi_reduction <maximumf>, %139, %cst_35 [2] : vector<1x8x8xf32> to vector<1x8xf32>
    %141 = vector.shape_cast %140 : vector<1x8xf32> to vector<1x8x1xf32>
    %142 = vector.broadcast %141 : vector<1x8x1xf32> to vector<1x8x8xf32>
    %143 = arith.cmpf oeq, %139, %142 : vector<1x8x8xf32>
    %c8_i32_36 = arith.constant 8 : i32
    %144 = vector.broadcast %c8_i32_36 : i32 to vector<1x8x8xi32>
    %145 = arith.select %143, %16, %144 : vector<1x8x8xi1>, vector<1x8x8xi32>
    %cst_37 = arith.constant dense<2147483647> : vector<1x8xi32>
    %146 = vector.multi_reduction <minsi>, %145, %cst_37 [2] : vector<1x8x8xi32> to vector<1x8xi32>
    %147 = vector.extract_strided_slice %8 {offsets = [6, 0, 0], sizes = [1, 1, 8], strides = [1, 1, 1]} : vector<8x1x8xf32> to vector<1x1x8xf32>
    %148 = vector.shape_cast %147 : vector<1x1x8xf32> to vector<1x8xf32>
    %149 = arith.addf %140, %148 : vector<1x8xf32>
    %150 = vector.extract_strided_slice %10 {offsets = [0, 6], sizes = [1, 1], strides = [1, 1]} : vector<1x8xf32> to vector<1x1xf32>
    %cst_38 = arith.constant 5.000000e-01 : f32
    %151 = vector.broadcast %cst_38 : f32 to vector<1x1xf32>
    %152 = arith.cmpf ogt, %150, %151 : vector<1x1xf32>
    %153 = vector.shape_cast %152 : vector<1x1xi1> to vector<1x1xi1>
    %154 = vector.broadcast %153 : vector<1x1xi1> to vector<1x8xi1>
    %155 = arith.select %154, %149, %135 : vector<1x8xi1>, vector<1x8xf32>
    %156 = vector.shape_cast %155 : vector<1x8xf32> to vector<1x1x8xf32>
    %157 = vector.shape_cast %14 : vector<8x8xf32> to vector<1x8x8xf32>
    %158 = vector.broadcast %156 : vector<1x1x8xf32> to vector<1x8x8xf32>
    %159 = arith.addf %158, %157 : vector<1x8x8xf32>
    %cst_39 = arith.constant dense<0xFF800000> : vector<1x8xf32>
    %160 = vector.multi_reduction <maximumf>, %159, %cst_39 [2] : vector<1x8x8xf32> to vector<1x8xf32>
    %161 = vector.shape_cast %160 : vector<1x8xf32> to vector<1x8x1xf32>
    %162 = vector.broadcast %161 : vector<1x8x1xf32> to vector<1x8x8xf32>
    %163 = arith.cmpf oeq, %159, %162 : vector<1x8x8xf32>
    %c8_i32_40 = arith.constant 8 : i32
    %164 = vector.broadcast %c8_i32_40 : i32 to vector<1x8x8xi32>
    %165 = arith.select %163, %16, %164 : vector<1x8x8xi1>, vector<1x8x8xi32>
    %cst_41 = arith.constant dense<2147483647> : vector<1x8xi32>
    %166 = vector.multi_reduction <minsi>, %165, %cst_41 [2] : vector<1x8x8xi32> to vector<1x8xi32>
    %167 = vector.extract_strided_slice %8 {offsets = [7, 0, 0], sizes = [1, 1, 8], strides = [1, 1, 1]} : vector<8x1x8xf32> to vector<1x1x8xf32>
    %168 = vector.shape_cast %167 : vector<1x1x8xf32> to vector<1x8xf32>
    %169 = arith.addf %160, %168 : vector<1x8xf32>
    %170 = vector.extract_strided_slice %10 {offsets = [0, 7], sizes = [1, 1], strides = [1, 1]} : vector<1x8xf32> to vector<1x1xf32>
    %cst_42 = arith.constant 5.000000e-01 : f32
    %171 = vector.broadcast %cst_42 : f32 to vector<1x1xf32>
    %172 = arith.cmpf ogt, %170, %171 : vector<1x1xf32>
    %173 = vector.shape_cast %172 : vector<1x1xi1> to vector<1x1xi1>
    %174 = vector.broadcast %173 : vector<1x1xi1> to vector<1x8xi1>
    %175 = arith.select %174, %169, %155 : vector<1x8xi1>, vector<1x8xf32>
    %176 = vector.extract_strided_slice %14 {offsets = [7, 0], sizes = [1, 8], strides = [1, 1]} : vector<8x8xf32> to vector<1x8xf32>
    %177 = arith.addf %175, %176 : vector<1x8xf32>
    %178 = vector.shape_cast %177 : vector<1x8xf32> to vector<1x1x8xf32>
    %c0_43 = arith.constant 0 : index
    %c0_44 = arith.constant 0 : index
    %c0_45 = arith.constant 0 : index
    %179 = vector.load %arg6[%c0_43, %c0_44, %c0_45] : memref<1x1x8xf32, #tpu.memory_space<vmem>>, vector<1x1x8xf32>
    tpu.vector_store %arg6[%c0_43, %c0_44, %c0_45], %178 {strides = array<i32>} : memref<1x1x8xf32, #tpu.memory_space<vmem>>, vector<1x1x8xf32>,
    %cst_46 = arith.constant dense<0xFF800000> : vector<1xf32>
    %180 = vector.multi_reduction <maximumf>, %177, %cst_46 [1] : vector<1x8xf32> to vector<1xf32>
    %181 = vector.shape_cast %180 : vector<1xf32> to vector<1x1xf32>
    %182 = vector.broadcast %181 : vector<1x1xf32> to vector<1x8xf32>
    %183 = arith.cmpf oeq, %177, %182 : vector<1x8xf32>
    %c8_i32_47 = arith.constant 8 : i32
    %184 = vector.broadcast %c8_i32_47 : i32 to vector<1x8xi32>
    %185 = arith.select %183, %15, %184 : vector<1x8xi1>, vector<1x8xi32>
    %cst_48 = arith.constant dense<2147483647> : vector<1xi32>
    %186 = vector.multi_reduction <minsi>, %185, %cst_48 [1] : vector<1x8xi32> to vector<1xi32>
    %187 = vector.shape_cast %186 : vector<1xi32> to vector<1x1xi32>
    %188 = tpu.iota {dimensions = array<i32: 1>} : vector<1x8xi32>
    %c0_i32 = arith.constant 0 : i32
    %189 = vector.broadcast %c0_i32 : i32 to vector<1x8xi32>
    %c7_i32 = arith.constant 7 : i32
    %190 = vector.broadcast %c7_i32 : i32 to vector<1x8xi32>
    %191 = arith.cmpi eq, %188, %190 : vector<1x8xi32>
    %c7_i32_49 = arith.constant 7 : i32
    %192 = vector.broadcast %c7_i32_49 : i32 to vector<1x1xi32>
    %193 = arith.cmpi sgt, %13, %192 : vector<1x1xi32>
    %194 = vector.broadcast %193 : vector<1x1xi1> to vector<1x8xi1>
    %195 = arith.andi %191, %194 : vector<1x8xi1>
    %196 = vector.shape_cast %187 : vector<1x1xi32> to vector<1x1xi32>
    %197 = vector.broadcast %196 : vector<1x1xi32> to vector<1x8xi32>
    %198 = arith.select %195, %197, %189 : vector<1x8xi1>, vector<1x8xi32>
    %199 = vector.broadcast %187 : vector<1x1xi32> to vector<1x8xi32>
    %200 = arith.cmpi eq, %15, %199 : vector<1x8xi32>
    %c0_i32_50 = arith.constant 0 : i32
    %201 = vector.broadcast %c0_i32_50 : i32 to vector<1x8xi32>
    %202 = arith.select %200, %166, %201 : vector<1x8xi1>, vector<1x8xi32>
    %cst_51 = arith.constant dense<0> : vector<1xi32>
    %203 = vector.multi_reduction <add>, %202, %cst_51 [1] : vector<1x8xi32> to vector<1xi32>
    %204 = vector.shape_cast %203 : vector<1xi32> to vector<1x1xi32>
    %c2_i32 = arith.constant 2 : i32
    %205 = vector.broadcast %c2_i32 : i32 to vector<1x1xi32>
    %206 = arith.subi %13, %205 : vector<1x1xi32>
    %c6_i32_52 = arith.constant 6 : i32
    %207 = vector.broadcast %c6_i32_52 : i32 to vector<1x1xi32>
    %208 = arith.cmpi sge, %206, %207 : vector<1x1xi32>
    %209 = arith.select %208, %204, %187 : vector<1x1xi1>, vector<1x1xi32>
    %c6_i32_53 = arith.constant 6 : i32
    %210 = vector.broadcast %c6_i32_53 : i32 to vector<1x8xi32>
    %211 = arith.cmpi eq, %188, %210 : vector<1x8xi32>
    %c6_i32_54 = arith.constant 6 : i32
    %212 = vector.broadcast %c6_i32_54 : i32 to vector<1x1xi32>
    %213 = arith.cmpi sgt, %13, %212 : vector<1x1xi32>
    %214 = vector.broadcast %213 : vector<1x1xi1> to vector<1x8xi1>
    %215 = arith.andi %211, %214 : vector<1x8xi1>
    %216 = vector.shape_cast %209 : vector<1x1xi32> to vector<1x1xi32>
    %217 = vector.broadcast %216 : vector<1x1xi32> to vector<1x8xi32>
    %218 = arith.select %215, %217, %198 : vector<1x8xi1>, vector<1x8xi32>
    %219 = vector.broadcast %209 : vector<1x1xi32> to vector<1x8xi32>
    %220 = arith.cmpi eq, %15, %219 : vector<1x8xi32>
    %c0_i32_55 = arith.constant 0 : i32
    %221 = vector.broadcast %c0_i32_55 : i32 to vector<1x8xi32>
    %222 = arith.select %220, %146, %221 : vector<1x8xi1>, vector<1x8xi32>
    %cst_56 = arith.constant dense<0> : vector<1xi32>
    %223 = vector.multi_reduction <add>, %222, %cst_56 [1] : vector<1x8xi32> to vector<1xi32>
    %224 = vector.shape_cast %223 : vector<1xi32> to vector<1x1xi32>
    %c2_i32_57 = arith.constant 2 : i32
    %225 = vector.broadcast %c2_i32_57 : i32 to vector<1x1xi32>
    %226 = arith.subi %13, %225 : vector<1x1xi32>
    %c5_i32 = arith.constant 5 : i32
    %227 = vector.broadcast %c5_i32 : i32 to vector<1x1xi32>
    %228 = arith.cmpi sge, %226, %227 : vector<1x1xi32>
    %229 = arith.select %228, %224, %209 : vector<1x1xi1>, vector<1x1xi32>
    %c5_i32_58 = arith.constant 5 : i32
    %230 = vector.broadcast %c5_i32_58 : i32 to vector<1x8xi32>
    %231 = arith.cmpi eq, %188, %230 : vector<1x8xi32>
    %c5_i32_59 = arith.constant 5 : i32
    %232 = vector.broadcast %c5_i32_59 : i32 to vector<1x1xi32>
    %233 = arith.cmpi sgt, %13, %232 : vector<1x1xi32>
    %234 = vector.broadcast %233 : vector<1x1xi1> to vector<1x8xi1>
    %235 = arith.andi %231, %234 : vector<1x8xi1>
    %236 = vector.shape_cast %229 : vector<1x1xi32> to vector<1x1xi32>
    %237 = vector.broadcast %236 : vector<1x1xi32> to vector<1x8xi32>
    %238 = arith.select %235, %237, %218 : vector<1x8xi1>, vector<1x8xi32>
    %239 = vector.broadcast %229 : vector<1x1xi32> to vector<1x8xi32>
    %240 = arith.cmpi eq, %15, %239 : vector<1x8xi32>
    %c0_i32_60 = arith.constant 0 : i32
    %241 = vector.broadcast %c0_i32_60 : i32 to vector<1x8xi32>
    %242 = arith.select %240, %126, %241 : vector<1x8xi1>, vector<1x8xi32>
    %cst_61 = arith.constant dense<0> : vector<1xi32>
    %243 = vector.multi_reduction <add>, %242, %cst_61 [1] : vector<1x8xi32> to vector<1xi32>
    %244 = vector.shape_cast %243 : vector<1xi32> to vector<1x1xi32>
    %c2_i32_62 = arith.constant 2 : i32
    %245 = vector.broadcast %c2_i32_62 : i32 to vector<1x1xi32>
    %246 = arith.subi %13, %245 : vector<1x1xi32>
    %c4_i32 = arith.constant 4 : i32
    %247 = vector.broadcast %c4_i32 : i32 to vector<1x1xi32>
    %248 = arith.cmpi sge, %246, %247 : vector<1x1xi32>
    %249 = arith.select %248, %244, %229 : vector<1x1xi1>, vector<1x1xi32>
    %c4_i32_63 = arith.constant 4 : i32
    %250 = vector.broadcast %c4_i32_63 : i32 to vector<1x8xi32>
    %251 = arith.cmpi eq, %188, %250 : vector<1x8xi32>
    %c4_i32_64 = arith.constant 4 : i32
    %252 = vector.broadcast %c4_i32_64 : i32 to vector<1x1xi32>
    %253 = arith.cmpi sgt, %13, %252 : vector<1x1xi32>
    %254 = vector.broadcast %253 : vector<1x1xi1> to vector<1x8xi1>
    %255 = arith.andi %251, %254 : vector<1x8xi1>
    %256 = vector.shape_cast %249 : vector<1x1xi32> to vector<1x1xi32>
    %257 = vector.broadcast %256 : vector<1x1xi32> to vector<1x8xi32>
    %258 = arith.select %255, %257, %238 : vector<1x8xi1>, vector<1x8xi32>
    %259 = vector.broadcast %249 : vector<1x1xi32> to vector<1x8xi32>
    %260 = arith.cmpi eq, %15, %259 : vector<1x8xi32>
    %c0_i32_65 = arith.constant 0 : i32
    %261 = vector.broadcast %c0_i32_65 : i32 to vector<1x8xi32>
    %262 = arith.select %260, %106, %261 : vector<1x8xi1>, vector<1x8xi32>
    %cst_66 = arith.constant dense<0> : vector<1xi32>
    %263 = vector.multi_reduction <add>, %262, %cst_66 [1] : vector<1x8xi32> to vector<1xi32>
    %264 = vector.shape_cast %263 : vector<1xi32> to vector<1x1xi32>
    %c2_i32_67 = arith.constant 2 : i32
    %265 = vector.broadcast %c2_i32_67 : i32 to vector<1x1xi32>
    %266 = arith.subi %13, %265 : vector<1x1xi32>
    %c3_i32 = arith.constant 3 : i32
    %267 = vector.broadcast %c3_i32 : i32 to vector<1x1xi32>
    %268 = arith.cmpi sge, %266, %267 : vector<1x1xi32>
    %269 = arith.select %268, %264, %249 : vector<1x1xi1>, vector<1x1xi32>
    %c3_i32_68 = arith.constant 3 : i32
    %270 = vector.broadcast %c3_i32_68 : i32 to vector<1x8xi32>
    %271 = arith.cmpi eq, %188, %270 : vector<1x8xi32>
    %c3_i32_69 = arith.constant 3 : i32
    %272 = vector.broadcast %c3_i32_69 : i32 to vector<1x1xi32>
    %273 = arith.cmpi sgt, %13, %272 : vector<1x1xi32>
    %274 = vector.broadcast %273 : vector<1x1xi1> to vector<1x8xi1>
    %275 = arith.andi %271, %274 : vector<1x8xi1>
    %276 = vector.shape_cast %269 : vector<1x1xi32> to vector<1x1xi32>
    %277 = vector.broadcast %276 : vector<1x1xi32> to vector<1x8xi32>
    %278 = arith.select %275, %277, %258 : vector<1x8xi1>, vector<1x8xi32>
    %279 = vector.broadcast %269 : vector<1x1xi32> to vector<1x8xi32>
    %280 = arith.cmpi eq, %15, %279 : vector<1x8xi32>
    %c0_i32_70 = arith.constant 0 : i32
    %281 = vector.broadcast %c0_i32_70 : i32 to vector<1x8xi32>
    %282 = arith.select %280, %86, %281 : vector<1x8xi1>, vector<1x8xi32>
    %cst_71 = arith.constant dense<0> : vector<1xi32>
    %283 = vector.multi_reduction <add>, %282, %cst_71 [1] : vector<1x8xi32> to vector<1xi32>
    %284 = vector.shape_cast %283 : vector<1xi32> to vector<1x1xi32>
    %c2_i32_72 = arith.constant 2 : i32
    %285 = vector.broadcast %c2_i32_72 : i32 to vector<1x1xi32>
    %286 = arith.subi %13, %285 : vector<1x1xi32>
    %c2_i32_73 = arith.constant 2 : i32
    %287 = vector.broadcast %c2_i32_73 : i32 to vector<1x1xi32>
    %288 = arith.cmpi sge, %286, %287 : vector<1x1xi32>
    %289 = arith.select %288, %284, %269 : vector<1x1xi1>, vector<1x1xi32>
    %c2_i32_74 = arith.constant 2 : i32
    %290 = vector.broadcast %c2_i32_74 : i32 to vector<1x8xi32>
    %291 = arith.cmpi eq, %188, %290 : vector<1x8xi32>
    %c2_i32_75 = arith.constant 2 : i32
    %292 = vector.broadcast %c2_i32_75 : i32 to vector<1x1xi32>
    %293 = arith.cmpi sgt, %13, %292 : vector<1x1xi32>
    %294 = vector.broadcast %293 : vector<1x1xi1> to vector<1x8xi1>
    %295 = arith.andi %291, %294 : vector<1x8xi1>
    %296 = vector.shape_cast %289 : vector<1x1xi32> to vector<1x1xi32>
    %297 = vector.broadcast %296 : vector<1x1xi32> to vector<1x8xi32>
    %298 = arith.select %295, %297, %278 : vector<1x8xi1>, vector<1x8xi32>
    %299 = vector.broadcast %289 : vector<1x1xi32> to vector<1x8xi32>
    %300 = arith.cmpi eq, %15, %299 : vector<1x8xi32>
    %c0_i32_76 = arith.constant 0 : i32
    %301 = vector.broadcast %c0_i32_76 : i32 to vector<1x8xi32>
    %302 = arith.select %300, %66, %301 : vector<1x8xi1>, vector<1x8xi32>
    %cst_77 = arith.constant dense<0> : vector<1xi32>
    %303 = vector.multi_reduction <add>, %302, %cst_77 [1] : vector<1x8xi32> to vector<1xi32>
    %304 = vector.shape_cast %303 : vector<1xi32> to vector<1x1xi32>
    %c2_i32_78 = arith.constant 2 : i32
    %305 = vector.broadcast %c2_i32_78 : i32 to vector<1x1xi32>
    %306 = arith.subi %13, %305 : vector<1x1xi32>
    %c1_i32 = arith.constant 1 : i32
    %307 = vector.broadcast %c1_i32 : i32 to vector<1x1xi32>
    %308 = arith.cmpi sge, %306, %307 : vector<1x1xi32>
    %309 = arith.select %308, %304, %289 : vector<1x1xi1>, vector<1x1xi32>
    %c1_i32_79 = arith.constant 1 : i32
    %310 = vector.broadcast %c1_i32_79 : i32 to vector<1x8xi32>
    %311 = arith.cmpi eq, %188, %310 : vector<1x8xi32>
    %c1_i32_80 = arith.constant 1 : i32
    %312 = vector.broadcast %c1_i32_80 : i32 to vector<1x1xi32>
    %313 = arith.cmpi sgt, %13, %312 : vector<1x1xi32>
    %314 = vector.broadcast %313 : vector<1x1xi1> to vector<1x8xi1>
    %315 = arith.andi %311, %314 : vector<1x8xi1>
    %316 = vector.shape_cast %309 : vector<1x1xi32> to vector<1x1xi32>
    %317 = vector.broadcast %316 : vector<1x1xi32> to vector<1x8xi32>
    %318 = arith.select %315, %317, %298 : vector<1x8xi1>, vector<1x8xi32>
    %319 = vector.broadcast %309 : vector<1x1xi32> to vector<1x8xi32>
    %320 = arith.cmpi eq, %15, %319 : vector<1x8xi32>
    %c0_i32_81 = arith.constant 0 : i32
    %321 = vector.broadcast %c0_i32_81 : i32 to vector<1x8xi32>
    %322 = arith.select %320, %46, %321 : vector<1x8xi1>, vector<1x8xi32>
    %cst_82 = arith.constant dense<0> : vector<1xi32>
    %323 = vector.multi_reduction <add>, %322, %cst_82 [1] : vector<1x8xi32> to vector<1xi32>
    %324 = vector.shape_cast %323 : vector<1xi32> to vector<1x1xi32>
    %c2_i32_83 = arith.constant 2 : i32
    %325 = vector.broadcast %c2_i32_83 : i32 to vector<1x1xi32>
    %326 = arith.subi %13, %325 : vector<1x1xi32>
    %c0_i32_84 = arith.constant 0 : i32
    %327 = vector.broadcast %c0_i32_84 : i32 to vector<1x1xi32>
    %328 = arith.cmpi sge, %326, %327 : vector<1x1xi32>
    %329 = arith.select %328, %324, %309 : vector<1x1xi1>, vector<1x1xi32>
    %c0_i32_85 = arith.constant 0 : i32
    %330 = vector.broadcast %c0_i32_85 : i32 to vector<1x8xi32>
    %331 = arith.cmpi eq, %188, %330 : vector<1x8xi32>
    %c0_i32_86 = arith.constant 0 : i32
    %332 = vector.broadcast %c0_i32_86 : i32 to vector<1x1xi32>
    %333 = arith.cmpi sgt, %13, %332 : vector<1x1xi32>
    %334 = vector.broadcast %333 : vector<1x1xi1> to vector<1x8xi1>
    %335 = arith.andi %331, %334 : vector<1x8xi1>
    %336 = vector.shape_cast %329 : vector<1x1xi32> to vector<1x1xi32>
    %337 = vector.broadcast %336 : vector<1x1xi32> to vector<1x8xi32>
    %338 = arith.select %335, %337, %318 : vector<1x8xi1>, vector<1x8xi32>
    %339 = vector.shape_cast %338 : vector<1x8xi32> to vector<1x1x8xi32>
    %c0_87 = arith.constant 0 : index
    %c0_88 = arith.constant 0 : index
    %c0_89 = arith.constant 0 : index
    %340 = vector.load %arg7[%c0_87, %c0_88, %c0_89] : memref<1x1x8xi32, #tpu.memory_space<vmem>>, vector<1x1x8xi32>
    tpu.vector_store %arg7[%c0_87, %c0_88, %c0_89], %339 {strides = array<i32>} : memref<1x1x8xi32, #tpu.memory_space<vmem>>, vector<1x1x8xi32>,
    return
  }
  func.func @transform_0(%arg0: i32) -> (i32, i32, i32) {
    %c0_i32 = arith.constant 0 : i32
    %c0_i32_0 = arith.constant 0 : i32
    %c0_i32_1 = arith.constant 0 : i32
    return %arg0, %c0_i32, %c0_i32_0 : i32, i32, i32
  }
  func.func @transform_1(%arg0: i32) -> (i32, i32) {
    %c0_i32 = arith.constant 0 : i32
    %c0_i32_0 = arith.constant 0 : i32
    %c0_i32_1 = arith.constant 0 : i32
    return %c0_i32, %c0_i32_0 : i32, i32
  }
  func.func @transform_2(%arg0: i32) -> (i32, i32) {
    %c0_i32 = arith.constant 0 : i32
    %c0_i32_0 = arith.constant 0 : i32
    %c0_i32_1 = arith.constant 0 : i32
    return %c0_i32, %c0_i32_0 : i32, i32
  }
  func.func @transform_3(%arg0: i32) -> (i32, i32, i32) {
    %c0_i32 = arith.constant 0 : i32
    %c0_i32_0 = arith.constant 0 : i32
    %c0_i32_1 = arith.constant 0 : i32
    return %arg0, %c0_i32, %c0_i32_0 : i32, i32, i32
  }
  func.func @transform_4(%arg0: i32) -> (i32, i32) {
    %c0_i32 = arith.constant 0 : i32
    %c0_i32_0 = arith.constant 0 : i32
    %c0_i32_1 = arith.constant 0 : i32
    return %c0_i32, %c0_i32_0 : i32, i32
  }
  func.func @transform_5(%arg0: i32) -> (i32, i32, i32) {
    %c0_i32 = arith.constant 0 : i32
    %c0_i32_0 = arith.constant 0 : i32
    %c0_i32_1 = arith.constant 0 : i32
    return %arg0, %c0_i32, %c0_i32_0 : i32, i32, i32
  }
  func.func @transform_6(%arg0: i32) -> (i32, i32, i32) {
    %c0_i32 = arith.constant 0 : i32
    %c0_i32_0 = arith.constant 0 : i32
    %c0_i32_1 = arith.constant 0 : i32
    return %arg0, %c0_i32, %c0_i32_0 : i32, i32, i32
  }
}

</mosaic_0001>

<llo_original>
// kernel: output_trans_forward.1
$region0: #{output_trans_forward.1}
  #allocation0 [shape = 'u32[]', space=smem, size = 0x4, offset = 0x4, fixed_abs, tag = 'smem constant byte address 0x4 - core index']
  #allocation1 [shape = 'u32[72,128]{1,0:T(1,128)}', space=vmem, size = 0x9000, scoped, tag = 'internal scratch']
  %s0 = inlined_call_operand.vmem [shape: f32[2,8,32], index: 0, kind: input, shape index: {}]
  %s1 = inlined_call_operand.vmem [shape: f32[32,8], index: 1, kind: input, shape index: {}]
  %s2 = inlined_call_operand.vmem [shape: f32[1,8], index: 2, kind: input, shape index: {}]
  %s3 = inlined_call_operand.vmem [shape: f32[2,1,8], index: 3, kind: input, shape index: {}]
  %s4 = inlined_call_operand.vmem [shape: f32[8,8], index: 4, kind: input, shape index: {}]
  %s5 = inlined_call_operand.hbm [shape: f32[2,1,8], index: 5, kind: output, shape index: {0}]
  %s6 = inlined_call_operand.hbm [shape: s32[2,1,8], index: 6, kind: output, shape index: {1}]
  %7 = xla_tuple %s5, %s6
  %s8 = sld [smem:[#allocation0]]
  $region61: #{output_trans_forward.1} parent=0
    _
  %s10 = ssub.s32 1, %s8
  %s11 = scalar_select 0, %s10, %s8
  $region1: #{output_trans_forward.1} parent=0
    #allocation2 [shape = 'u8[1024]{0}', space=vmem, size = 0x400, scoped, tag = 'output window, operand 0']
    #allocation3 [shape = 's32[2]{0}', space=sflag, size = 0x8, scoped, tag = 'scoped memory for output_trans_forward.1']
    #allocation4 [shape = 'u8[1024]{0}', space=vmem, size = 0x400, scoped, tag = 'output window, operand 1']
    #allocation5 [shape = 's32[2]{0}', space=sflag, size = 0x8, scoped, tag = 'scoped memory for output_trans_forward.1']
    %12 = vsyncpa [#allocation3], 0
    %s13 = scalar_lea.sflag [#allocation3], 1
    %14 = vsyncpa %s13, 0
    %15 = vsyncpa [#allocation5], 0
    %s16 = scalar_lea.sflag [#allocation5], 1
    %17 = vsyncpa %s16, 0
    loop: start=0, step=1, limit=4
    $region2: #{output_trans_forward.1} parent=1 // loop_pre_header
      _
    $region3: #{output_trans_forward.1} parent=1 // loop_header
      %s19 = sphi 0, %s23
      %p20 = scmp.ge.s32.totalorder %s19, 4
      %s29 = sphi 0, %s31
      %s32 = sphi 0, %s29
      %s33 = sphi 0, %s32
      %s49 = sphi 0, %s33
      %s53 = sphi 0, %s53
      %s55 = sphi 0, %s53
      %s56 = sphi 0, %s55
      %s70 = sphi 0, %s56
      %s74 = sphi 0, %s74
      %s76 = sphi 0, %s74
      %s77 = sphi 0, %s76
      %s91 = sphi 0, %s77
      %s97 = sphi 0, %s99
      %s100 = sphi 0, %s97
      %s101 = sphi 0, %s100
      %s117 = sphi 0, %s101
      %s121 = sphi 0, %s121
      %s123 = sphi 0, %s121
      %s124 = sphi 0, %s123
      %s138 = sphi 0, %s124
      %s144 = sphi 0, %s146
      %s147 = sphi 0, %s144
      %s148 = sphi 0, %s147
      %s164 = sphi 0, %s148
      %s170 = sphi 0, %s172
      %s173 = sphi 0, %s170
      %s174 = sphi 0, %s173
      %s190 = sphi 0, %s174
    $region4: #{output_trans_forward.1} parent=1 // loop_header_branch
      %22 = sbr.rel (%p20) target = $region8
    $region5: #{output_trans_forward.1} parent=1 // loop_body
      %s24 = ssub.s32 %s19, 1
      %s25 = ssub.s32 %s19, 2
      %s26 = sadd.s32 %s19, 1
      %s27 = ssub.s32 %s19, %s26
      %p28 = scmp.eq.s32.totalorder %s27, 0
      %s30 = sadd.s32 %s29, 1
      %s31 = scalar_select %p28, %s29, %s30
      %p34 = pneg %p28
      %p35 = scmp.eq.s32.totalorder %s19, 1
      %p36 = por %p34, %p35
      %p37 = scmp.ne.s32.totalorder %s29, %s32
      %p38 = scmp.eq.s32.totalorder %s19, 0
      %p39 = por %p37, %p38
      %p40 = scmp.ne.s32.totalorder %s29, %s32
      %p41 = scmp.eq.s32.totalorder %s24, 1
      %p42 = por %p40, %p41
      %p43 = scmp.ne.s32.totalorder %s32, %s33
      %p44 = scmp.eq.s32.totalorder %s24, 0
      %p45 = por %p43, %p44
      %p46 = scmp.ne.s32.totalorder %s32, %s33
      %p47 = scmp.eq.s32.totalorder %s25, 1
      %p48 = por %p46, %p47
      %p50 = scmp.ne.s32.totalorder %s33, %s49
      %p51 = scmp.eq.s32.totalorder %s25, 0
      %p52 = por %p50, %p51
      %s54 = sadd.s32 %s53, 1
      %p57 = scmp.eq.s32.totalorder %s19, 1
      %p58 = scmp.ne.s32.totalorder %s53, %s55
      %p59 = scmp.eq.s32.totalorder %s19, 0
      %p60 = por %p58, %p59
      %p61 = scmp.ne.s32.totalorder %s53, %s55
      %p62 = scmp.eq.s32.totalorder %s24, 1
      %p63 = por %p61, %p62
      %p64 = scmp.ne.s32.totalorder %s55, %s56
      %p65 = scmp.eq.s32.totalorder %s24, 0
      %p66 = por %p64, %p65
      %p67 = scmp.ne.s32.totalorder %s55, %s56
      %p68 = scmp.eq.s32.totalorder %s25, 1
      %p69 = por %p67, %p68
      %p71 = scmp.ne.s32.totalorder %s56, %s70
      %p72 = scmp.eq.s32.totalorder %s25, 0
      %p73 = por %p71, %p72
      %s75 = sadd.s32 %s74, 1
      %p78 = scmp.eq.s32.totalorder %s19, 1
      %p79 = scmp.ne.s32.totalorder %s74, %s76
      %p80 = scmp.eq.s32.totalorder %s19, 0
      %p81 = por %p79, %p80
      %p82 = scmp.ne.s32.totalorder %s74, %s76
      %p83 = scmp.eq.s32.totalorder %s24, 1
      %p84 = por %p82, %p83
      %p85 = scmp.ne.s32.totalorder %s76, %s77
      %p86 = scmp.eq.s32.totalorder %s24, 0
      %p87 = por %p85, %p86
      %p88 = scmp.ne.s32.totalorder %s76, %s77
      %p89 = scmp.eq.s32.totalorder %s25, 1
      %p90 = por %p88, %p89
      %p92 = scmp.ne.s32.totalorder %s77, %s91
      %p93 = scmp.eq.s32.totalorder %s25, 0
      %p94 = por %p92, %p93
      %s95 = ssub.s32 %s19, %s26
      %p96 = scmp.eq.s32.totalorder %s95, 0
      %s98 = sadd.s32 %s97, 1
      %s99 = scalar_select %p96, %s97, %s98
      %p102 = pneg %p96
      %p103 = scmp.eq.s32.totalorder %s19, 1
      %p104 = por %p102, %p103
      %p105 = scmp.ne.s32.totalorder %s97, %s100
      %p106 = scmp.eq.s32.totalorder %s19, 0
      %p107 = por %p105, %p106
      %p108 = scmp.ne.s32.totalorder %s97, %s100
      %p109 = scmp.eq.s32.totalorder %s24, 1
      %p110 = por %p108, %p109
      %p111 = scmp.ne.s32.totalorder %s100, %s101
      %p112 = scmp.eq.s32.totalorder %s24, 0
      %p113 = por %p111, %p112
      %p114 = scmp.ne.s32.totalorder %s100, %s101
      %p115 = scmp.eq.s32.totalorder %s25, 1
      %p116 = por %p114, %p115
      %p118 = scmp.ne.s32.totalorder %s101, %s117
      %p119 = scmp.eq.s32.totalorder %s25, 0
      %p120 = por %p118, %p119
      %s122 = sadd.s32 %s121, 1
      %p125 = scmp.eq.s32.totalorder %s19, 1
      %p126 = scmp.ne.s32.totalorder %s121, %s123
      %p127 = scmp.eq.s32.totalorder %s19, 0
      %p128 = por %p126, %p127
      %p129 = scmp.ne.s32.totalorder %s121, %s123
      %p130 = scmp.eq.s32.totalorder %s24, 1
      %p131 = por %p129, %p130
      %p132 = scmp.ne.s32.totalorder %s123, %s124
      %p133 = scmp.eq.s32.totalorder %s24, 0
      %p134 = por %p132, %p133
      %p135 = scmp.ne.s32.totalorder %s123, %s124
      %p136 = scmp.eq.s32.totalorder %s25, 1
      %p137 = por %p135, %p136
      %p139 = scmp.ne.s32.totalorder %s124, %s138
      %p140 = scmp.eq.s32.totalorder %s25, 0
      %p141 = por %p139, %p140
      %s142 = ssub.s32 %s19, %s26
      %p143 = scmp.eq.s32.totalorder %s142, 0
      %s145 = sadd.s32 %s144, 1
      %s146 = scalar_select %p143, %s144, %s145
      %p149 = pneg %p143
      %p150 = scmp.eq.s32.totalorder %s19, 1
      %p151 = por %p149, %p150
      %p152 = scmp.ne.s32.totalorder %s144, %s147
      %p153 = scmp.eq.s32.totalorder %s19, 0
      %p154 = por %p152, %p153
      %p155 = scmp.ne.s32.totalorder %s144, %s147
      %p156 = scmp.eq.s32.totalorder %s24, 1
      %p157 = por %p155, %p156
      %p158 = scmp.ne.s32.totalorder %s147, %s148
      %p159 = scmp.eq.s32.totalorder %s24, 0
      %p160 = por %p158, %p159
      %p161 = scmp.ne.s32.totalorder %s147, %s148
      %p162 = scmp.eq.s32.totalorder %s25, 1
      %p163 = por %p161, %p162
      %p165 = scmp.ne.s32.totalorder %s148, %s164
      %p166 = scmp.eq.s32.totalorder %s25, 0
      %p167 = por %p165, %p166
      %s168 = ssub.s32 %s19, %s26
      %p169 = scmp.eq.s32.totalorder %s168, 0
      %s171 = sadd.s32 %s170, 1
      %s172 = scalar_select %p169, %s170, %s171
      %p175 = pneg %p169
      %p176 = scmp.eq.s32.totalorder %s19, 1
      %p177 = por %p175, %p176
      %p178 = scmp.ne.s32.totalorder %s170, %s173
      %p179 = scmp.eq.s32.totalorder %s19, 0
      %p180 = por %p178, %p179
      %p181 = scmp.ne.s32.totalorder %s170, %s173
      %p182 = scmp.eq.s32.totalorder %s24, 1
      %p183 = por %p181, %p182
      %p184 = scmp.ne.s32.totalorder %s173, %s174
      %p185 = scmp.eq.s32.totalorder %s24, 0
      %p186 = por %p184, %p185
      %p187 = scmp.ne.s32.totalorder %s173, %s174
      %p188 = scmp.eq.s32.totalorder %s25, 1
      %p189 = por %p187, %p188
      %p191 = scmp.ne.s32.totalorder %s174, %s190
      %p192 = scmp.eq.s32.totalorder %s25, 0
      %p193 = por %p191, %p192
      %p194 = scmp.le.s32.totalorder 1, %s19
      %p195 = scmp.lt.s32.totalorder %s19, 3
      %p196 = pnand %p194, %p195
      %p197 = pneg %p196
      // Predicated region
      $region9: #{output_trans_forward.1} parent=5 // pred_check
        _
      $region10: #{output_trans_forward.1} parent=5 // pred_check_branch
        %199 = sbr.rel (%p196) target = $region12
      $region11: #{output_trans_forward.1} parent=5 // pred_region
        %s200 = ssub.s32 %s19, 1
        // Predicated region
        $region13: #{output_trans_forward.1} parent=11 // pred_check
          %p201 = pneg %p66
        $region14: #{output_trans_forward.1} parent=11 // pred_check_branch
          %203 = sbr.rel (%p201) target = $region16
        $region15: #{output_trans_forward.1} parent=11 // pred_region
          _
        $region16: #{output_trans_forward.1} parent=11 // pred_fallthru
          _
        // Predicated region
        $region17: #{output_trans_forward.1} parent=11 // pred_check
          %p204 = pneg %p87
        $region18: #{output_trans_forward.1} parent=11 // pred_check_branch
          %206 = sbr.rel (%p204) target = $region20
        $region19: #{output_trans_forward.1} parent=11 // pred_region
          _
        $region20: #{output_trans_forward.1} parent=11 // pred_fallthru
          _
        // Predicated region
        $region21: #{output_trans_forward.1} parent=11 // pred_check
          %p207 = pneg %p134
        $region22: #{output_trans_forward.1} parent=11 // pred_check_branch
          %209 = sbr.rel (%p207) target = $region24
        $region23: #{output_trans_forward.1} parent=11 // pred_region
          _
        $region24: #{output_trans_forward.1} parent=11 // pred_fallthru
          _
      $region12: #{output_trans_forward.1} parent=5 // pred_fallthru
        _
      %p210 = scmp.lt.s32.totalorder %s19, 2
      // Predicated region
      $region25: #{output_trans_forward.1} parent=5 // pred_check
        %p211 = pneg %p210
      $region26: #{output_trans_forward.1} parent=5 // pred_check_branch
        %213 = sbr.rel (%p211) target = $region28
      $region27: #{output_trans_forward.1} parent=5 // pred_region
        // Predicated region
        $region29: #{output_trans_forward.1} parent=27 // pred_check
          %p214 = pneg %p39
        $region30: #{output_trans_forward.1} parent=27 // pred_check_branch
          %216 = sbr.rel (%p214) target = $region32
        $region31: #{output_trans_forward.1} parent=27 // pred_region
          %p217 = scmp.lt.s32.totalorder %s19, 1
          %s218 = scalar_select %p217, %s19, 1
          %s219 = smul.addr %s218, 8
          %s220 = scalar_lea.vmem %s0, %s219
        $region32: #{output_trans_forward.1} parent=27 // pred_fallthru
          _
        // Predicated region
        $region33: #{output_trans_forward.1} parent=27 // pred_check
          %p221 = pneg %p107
        $region34: #{output_trans_forward.1} parent=27 // pred_check_branch
          %223 = sbr.rel (%p221) target = $region36
        $region35: #{output_trans_forward.1} parent=27 // pred_region
          %p224 = scmp.lt.s32.totalorder %s19, 1
          %s225 = scalar_select %p224, %s19, 1
          %s226 = scalar_lea.vmem %s3, %s225
        $region36: #{output_trans_forward.1} parent=27 // pred_fallthru
          _
      $region28: #{output_trans_forward.1} parent=5 // pred_fallthru
        _
      %p227 = scmp.le.s32.totalorder 1, %s19
      %p228 = scmp.lt.s32.totalorder %s19, 3
      %p229 = pnand %p227, %p228
      %p230 = pneg %p229
      // Predicated region
      $region37: #{output_trans_forward.1} parent=5 // pred_check
        _
      $region38: #{output_trans_forward.1} parent=5 // pred_check_branch
        %232 = sbr.rel (%p229) target = $region40
      $region39: #{output_trans_forward.1} parent=5 // pred_region
        %s233 = ssub.s32 %s19, 1
        %p234 = scmp.lt.s32.totalorder %s24, 1
        %s235 = scalar_select %p234, %s24, 1
        %s236 = smul.addr %s235, 8
        %s237 = scalar_lea.vmem %s0, %s236
        %p238 = pneg %p45
        %p239 = pneg %p42
        %p240 = pneg %p66
        %p241 = pneg %p63
        %p242 = pneg %p87
        %p243 = pneg %p84
        %p244 = scmp.lt.s32.totalorder %s24, 1
        %s245 = scalar_select %p244, %s24, 1
        %s246 = scalar_lea.vmem %s3, %s245
        %p247 = pneg %p113
        %p248 = pneg %p110
        %p249 = pneg %p134
        %p250 = pneg %p131
        %p251 = pneg %p160
        %p252 = pneg %p157
        %s253 = sand.u32 %s147, 1
        %s254 = scalar_lea.sflag [#allocation3], %s253
        %s255 = sand.u32 %s147, 1
        %s256 = scalar_lea.vmem [#allocation2], %s255
        %p257 = pneg %p186
        %p258 = pneg %p183
        %s259 = sand.u32 %s173, 1
        %s260 = scalar_lea.sflag [#allocation5], %s259
        %s261 = sand.u32 %s173, 1
        %s262 = scalar_lea.vmem [#allocation4], %s261
        %p263 = scmp.lt.s32.totalorder %s24, 1
        %s264 = scalar_select %p263, %s24, 1
        %s265 = smul.addr %s264, 8
        %s266 = scalar_lea.vmem %s0, %s265
        %p267 = scmp.lt.s32.totalorder %s24, 1
        %s268 = scalar_select %p267, %s24, 1
        %s269 = scalar_lea.vmem %s3, %s268
        %v270 = vld [vmem:[%s266] sm:$0xff]
        %v271 = vld [vmem:[%s1] sm:$0xff]
        %v272 = vld [vmem:[%s1 + $0x8] sm:$0xff]
        %v273 = vld [vmem:[%s1 + $0x10] sm:$0xff]
        %v274 = vld [vmem:[%s1 + $0x18] sm:$0xff]
        %v275 = vld [vmem:[%s2] sm:$0x1]
        %v277 = vperm.slane %v275, 0
        %vm279 = vcmask 261120
        %v281 = vsel %vm279, %v270, 0
        %283 = vmatpush.msra.mxu0 0.0
        %284 = vmatpush.msra.mxu0 0.0
        %285 = vmatpush.msra.mxu0 0.0
        %286 = vmatpush.msra.mxu0 0.0
        %287 = vmatpush.msra.mxu0 0.0
        %288 = vmatpush.msra.mxu0 0.0
        %289 = vmatpush.msra.mxu0 0.0
        %290 = vmatpush.msra.mxu0 0.0
        %291 = vmatpush.msra.mxu0 0.0
        %292 = vmatpush.msra.mxu0 0.0
        %293 = vmatpush.msra.mxu0 0.0
        %294 = vmatpush.msra.mxu0 0.0
        %295 = vmatpush.msra.mxu0 %v274
        %296 = vmatpush.msra.mxu0 %v273
        %297 = vmatpush.msra.mxu0 %v272
        %298 = vmatpush.msra.mxu0 %v271
        %299 = vmatmul.f32.gmra.mxu0 %v281
        %v300 = vpop.f32.mrf.mxu0
        %v301 = vadd.f32 %v277, %v300
        %302 = vdwg.mxu0
        %v303 = vrot.slane %v301, 4
        %vm304 = vcmask 1047556
        %v305 = vsel %vm304, 0.0, %v303
        %v307 = vunpack.c.l.s4 1983009808
        %v308 = vunpack.c.0.s8 %v307
        %v309 = vperm.slane %v301, %v308
        %v311 = vunpack.c.l.s4 1983009808
        %v312 = vunpack.c.0.s8 %v311
        %v313 = vperm.slane %v305, %v312
        %v314 = vrot.slane %v309, 4
        %v315 = vsel %vm304, 0.0, %v314
        %v317 = vunpack.c.l.s4 1934713408
        %v318 = vunpack.c.0.s8 %v317
        %v319 = vperm.slane %v309, %v318
        %v321 = vunpack.c.l.s4 1934713408
        %v322 = vunpack.c.0.s8 %v321
        %v323 = vperm.slane %v315, %v322
        %v324 = vrot.slane %v313, 4
        %v325 = vsel %vm304, 0.0, %v324
        %v327 = vunpack.c.l.s4 1934713408
        %v328 = vunpack.c.0.s8 %v327
        %v329 = vperm.slane %v313, %v328
        %v331 = vunpack.c.l.s4 1934713408
        %v332 = vunpack.c.0.s8 %v331
        %v333 = vperm.slane %v325, %v332
        %v334 = vrot.slane %v319, 4
        %v335 = vsel %vm304, 0.0, %v334
        %v336 = vrot.slane %v323, 4
        %v337 = vsel %vm304, 0.0, %v336
        %v338 = vrot.slane %v329, 4
        %v339 = vsel %vm304, 0.0, %v338
        %v340 = vrot.slane %v333, 4
        %v341 = vsel %vm304, 0.0, %v340
        %v342 = vld [vmem:[%s269] sm:$0x1]
        %vm343 = vcmask 57344
        %v344 = vsel %vm343, %v342, 0.0
        %345 = vadd.xlane.f32.xlu0 %v344
        %v346 = vpop.xlane.xlu0 %345
        %v347 = vcvt.f32.s32.to.zero.pseudo %v346
        %v348 = vld [vmem:[%s4] sm:$0xff]
        %v349 = vlaneseq
        %v350 = vand.u32 %v349, 127
        %vm351 = vcmp.eq.s32.totalorder %v350, 6
        %v352 = vsel %vm351, 0.0, -100000.0
        %v353 = vadd.f32 %v352, %v348
        %vm354 = vcmask 64512
        %v355 = vsel %vm354, %v353, -inf
        %356 = vmax.xlane.f32.xlu0 %v355
        %v357 = vpop.xlane.xlu0 %356
        %v359 = vperm.slane %v319, 0
        %v360 = vlaneseq
        %v361 = vshrl.u32 %v360, 7
        %363 = vset.pattern.permute.xlu0 %v361
        %364 = vperm.xlu0 %363, %v359
        %v365 = vpop.permute.xlu0 %364
        %v367 = vadd.f32 %v357, %v365
        %vm368 = vcmp.gt.f32.partialorder %v342, 0.5
        %v369 = vsel %vm368, 1, 0
        %370 = vset.pattern.permute.xlu0 0
        %371 = vperm.xlu0 %370, %v369
        %v372 = vpop.permute.xlu0 %371
        %v373 = vperm.slane %v372, 0
        %vm374 = vcmp.eq.s32.totalorder %v373, 1
        %v376 = vlaneseq
        %v377 = vshrl.u32 %v376, 7
        %379 = vset.pattern.permute.xlu0 %v377
        %380 = vperm.xlu0 %379, %v352
        %v381 = vpop.permute.xlu0 %380
        %v383 = vsel %vm374, %v367, %v381
        %v385 = vperm.slane %v348, 0
        %v386 = vlaneseq
        %v387 = vshrl.u32 %v386, 7
        %389 = vset.pattern.permute.xlu0 %v387
        %390 = vperm.xlu0 %389, %v385
        %v391 = vpop.permute.xlu0 %390
        %v392 = vperm.slane %v348, 1
        %v393 = vlaneseq
        %v394 = vshrl.u32 %v393, 7
        %396 = vset.pattern.permute.xlu0 %v394
        %397 = vperm.xlu0 %396, %v392
        %v398 = vpop.permute.xlu0 %397
        %v399 = vperm.slane %v348, 2
        %v400 = vlaneseq
        %v401 = vshrl.u32 %v400, 7
        %403 = vset.pattern.permute.xlu0 %v401
        %404 = vperm.xlu0 %403, %v399
        %v405 = vpop.permute.xlu0 %404
        %v406 = vperm.slane %v348, 3
        %v407 = vlaneseq
        %v408 = vshrl.u32 %v407, 7
        %410 = vset.pattern.permute.xlu0 %v408
        %411 = vperm.xlu0 %410, %v406
        %v412 = vpop.permute.xlu0 %411
        %v413 = vperm.slane %v348, 4
        %v414 = vlaneseq
        %v415 = vshrl.u32 %v414, 7
        %417 = vset.pattern.permute.xlu0 %v415
        %418 = vperm.xlu0 %417, %v413
        %v419 = vpop.permute.xlu0 %418
        %v420 = vperm.slane %v348, 5
        %v421 = vlaneseq
        %v422 = vshrl.u32 %v421, 7
        %424 = vset.pattern.permute.xlu0 %v422
        %425 = vperm.xlu0 %424, %v420
        %v426 = vpop.permute.xlu0 %425
        %v427 = vperm.slane %v348, 6
        %v428 = vlaneseq
        %v429 = vshrl.u32 %v428, 7
        %431 = vset.pattern.permute.xlu0 %v429
        %432 = vperm.xlu0 %431, %v427
        %v433 = vpop.permute.xlu0 %432
        %v434 = vperm.slane %v348, 7
        %v435 = vlaneseq
        %v436 = vshrl.u32 %v435, 7
        %438 = vset.pattern.permute.xlu0 %v436
        %439 = vperm.xlu0 %438, %v434
        %v440 = vpop.permute.xlu0 %439
        %v449 = vadd.f32 %v383, %v391
        %v450 = vadd.f32 %v383, %v398
        %v451 = vadd.f32 %v383, %v405
        %v452 = vadd.f32 %v383, %v412
        %v453 = vadd.f32 %v383, %v419
        %v454 = vadd.f32 %v383, %v426
        %v455 = vadd.f32 %v383, %v433
        %v456 = vadd.f32 %v383, %v440
        %465 = vset.pattern.permute.xlu0 0
        %466 = vperm.xlu0 %465, %v449
        %v467 = vpop.permute.xlu0 %466
        %468 = vset.pattern.permute.xlu0 0
        %469 = vperm.xlu0 %468, %v450
        %v470 = vpop.permute.xlu0 %469
        %471 = vset.pattern.permute.xlu0 0
        %472 = vperm.xlu0 %471, %v451
        %v473 = vpop.permute.xlu0 %472
        %474 = vset.pattern.permute.xlu0 0
        %475 = vperm.xlu0 %474, %v452
        %v476 = vpop.permute.xlu0 %475
        %477 = vset.pattern.permute.xlu0 0
        %478 = vperm.xlu0 %477, %v453
        %v479 = vpop.permute.xlu0 %478
        %480 = vset.pattern.permute.xlu0 0
        %481 = vperm.xlu0 %480, %v454
        %v482 = vpop.permute.xlu0 %481
        %483 = vset.pattern.permute.xlu0 0
        %484 = vperm.xlu0 %483, %v455
        %v485 = vpop.permute.xlu0 %484
        %486 = vset.pattern.permute.xlu0 0
        %487 = vperm.xlu0 %486, %v456
        %v488 = vpop.permute.xlu0 %487
        %v489 = vperm.slane %v467, %v350
        %v490 = vperm.slane %v470, %v350
        %v491 = vperm.slane %v473, %v350
        %v492 = vperm.slane %v476, %v350
        %v493 = vperm.slane %v479, %v350
        %v494 = vperm.slane %v482, %v350
        %v495 = vperm.slane %v485, %v350
        %v496 = vperm.slane %v488, %v350
        %vm497 = vcmask 1041409
        %v498 = vsel %vm497, %v490, %v489
        %vm499 = vcmask 1042434
        %v500 = vsel %vm499, %v491, %v498
        %vm501 = vcmask 1043459
        %v502 = vsel %vm501, %v492, %v500
        %vm503 = vcmask 1044484
        %v504 = vsel %vm503, %v493, %v502
        %vm505 = vcmask 1045509
        %v506 = vsel %vm505, %v494, %v504
        %vm507 = vcmask 1046534
        %v508 = vsel %vm507, %v495, %v506
        %vm509 = vcmask 1047559
        %v510 = vsel %vm509, %v496, %v508
        %v512 = vsel %vm354, %v510, -inf
        %513 = vmax.xlane.f32.xlu0 %v512
        %v514 = vpop.xlane.xlu0 %513
        %v516 = vperm.slane %v514, 0
        %v517 = vperm.slane %v514, 1
        %v518 = vperm.slane %v514, 2
        %v519 = vperm.slane %v514, 3
        %v520 = vperm.slane %v514, 4
        %v521 = vperm.slane %v514, 5
        %v522 = vperm.slane %v514, 6
        %v523 = vperm.slane %v514, 7
        %vm532 = vcmp.eq.f32.partialorder %v449, %v516
        %vm533 = vcmp.eq.f32.partialorder %v450, %v517
        %vm534 = vcmp.eq.f32.partialorder %v451, %v518
        %vm535 = vcmp.eq.f32.partialorder %v452, %v519
        %vm536 = vcmp.eq.f32.partialorder %v453, %v520
        %vm537 = vcmp.eq.f32.partialorder %v454, %v521
        %vm538 = vcmp.eq.f32.partialorder %v455, %v522
        %vm539 = vcmp.eq.f32.partialorder %v456, %v523
        %v540 = vlaneseq
        %v541 = vshrl.u32 %v540, 7
        %543 = vset.pattern.permute.xlu0 %v541
        %544 = vperm.xlu0 %543, %v350
        %v545 = vpop.permute.xlu0 %544
        %v546 = vsel %vm532, %v545, 8
        %v547 = vsel %vm533, %v545, 8
        %v548 = vsel %vm534, %v545, 8
        %v549 = vsel %vm535, %v545, 8
        %v550 = vsel %vm536, %v545, 8
        %v551 = vsel %vm537, %v545, 8
        %v552 = vsel %vm538, %v545, 8
        %v553 = vsel %vm539, %v545, 8
        %554 = vset.pattern.permute.xlu0 0
        %555 = vperm.xlu0 %554, %v546
        %v556 = vpop.permute.xlu0 %555
        %557 = vset.pattern.permute.xlu0 0
        %558 = vperm.xlu0 %557, %v547
        %v559 = vpop.permute.xlu0 %558
        %560 = vset.pattern.permute.xlu0 0
        %561 = vperm.xlu0 %560, %v548
        %v562 = vpop.permute.xlu0 %561
        %563 = vset.pattern.permute.xlu0 0
        %564 = vperm.xlu0 %563, %v549
        %v565 = vpop.permute.xlu0 %564
        %566 = vset.pattern.permute.xlu0 0
        %567 = vperm.xlu0 %566, %v550
        %v568 = vpop.permute.xlu0 %567
        %569 = vset.pattern.permute.xlu0 0
        %570 = vperm.xlu0 %569, %v551
        %v571 = vpop.permute.xlu0 %570
        %572 = vset.pattern.permute.xlu0 0
        %573 = vperm.xlu0 %572, %v552
        %v574 = vpop.permute.xlu0 %573
        %575 = vset.pattern.permute.xlu0 0
        %576 = vperm.xlu0 %575, %v553
        %v577 = vpop.permute.xlu0 %576
        %v578 = vperm.slane %v556, %v350
        %v579 = vperm.slane %v559, %v350
        %v580 = vperm.slane %v562, %v350
        %v581 = vperm.slane %v565, %v350
        %v582 = vperm.slane %v568, %v350
        %v583 = vperm.slane %v571, %v350
        %v584 = vperm.slane %v574, %v350
        %v585 = vperm.slane %v577, %v350
        %v586 = vsel %vm497, %v579, %v578
        %v587 = vsel %vm499, %v580, %v586
        %v588 = vsel %vm501, %v581, %v587
        %v589 = vsel %vm503, %v582, %v588
        %v590 = vsel %vm505, %v583, %v589
        %v591 = vsel %vm507, %v584, %v590
        %v592 = vsel %vm509, %v585, %v591
        %v593 = vsel %vm354, %v592, 2147483647
        %v594 = vand.u32 %v593, 65535
        %v595 = vshra.s32 %v593, 16
        %v596 = vcvt.s32.f32 %v594
        %v597 = vcvt.s32.f32 %v595
        %598 = vmin.xlane.f32.xlu0 %v597
        %v599 = vpop.xlane.xlu0 %598
        %vm600 = vcmp.eq.f32.partialorder %v597, %v599
        %v601 = vsel %vm600, %v596, inf
        %602 = vmin.xlane.f32.xlu0 %v601
        %v603 = vpop.xlane.xlu0 %602
        %v604 = vcvt.f32.s32 %v603
        %v605 = vcvt.f32.s32 %v599
        %v606 = vshll.u32 %v605, 16
        %v607 = vadd.s32 %v606, %v604
        %v609 = vperm.slane %v335, 0
        %v610 = vlaneseq
        %v611 = vshrl.u32 %v610, 7
        %613 = vset.pattern.permute.xlu0 %v611
        %614 = vperm.xlu0 %613, %v609
        %v615 = vpop.permute.xlu0 %614
        %v617 = vadd.f32 %v514, %v615
        %618 = vset.pattern.permute.xlu0 1
        %619 = vperm.xlu0 %618, %v369
        %v620 = vpop.permute.xlu0 %619
        %v621 = vperm.slane %v620, 0
        %vm622 = vcmp.eq.s32.totalorder %v621, 1
        %v623 = vsel %vm622, %v617, %v383
        %v624 = vadd.f32 %v623, %v391
        %v625 = vadd.f32 %v623, %v398
        %v626 = vadd.f32 %v623, %v405
        %v627 = vadd.f32 %v623, %v412
        %v628 = vadd.f32 %v623, %v419
        %v629 = vadd.f32 %v623, %v426
        %v630 = vadd.f32 %v623, %v433
        %v631 = vadd.f32 %v623, %v440
        %640 = vset.pattern.permute.xlu0 0
        %641 = vperm.xlu0 %640, %v624
        %v642 = vpop.permute.xlu0 %641
        %643 = vset.pattern.permute.xlu0 0
        %644 = vperm.xlu0 %643, %v625
        %v645 = vpop.permute.xlu0 %644
        %646 = vset.pattern.permute.xlu0 0
        %647 = vperm.xlu0 %646, %v626
        %v648 = vpop.permute.xlu0 %647
        %649 = vset.pattern.permute.xlu0 0
        %650 = vperm.xlu0 %649, %v627
        %v651 = vpop.permute.xlu0 %650
        %652 = vset.pattern.permute.xlu0 0
        %653 = vperm.xlu0 %652, %v628
        %v654 = vpop.permute.xlu0 %653
        %655 = vset.pattern.permute.xlu0 0
        %656 = vperm.xlu0 %655, %v629
        %v657 = vpop.permute.xlu0 %656
        %658 = vset.pattern.permute.xlu0 0
        %659 = vperm.xlu0 %658, %v630
        %v660 = vpop.permute.xlu0 %659
        %661 = vset.pattern.permute.xlu0 0
        %662 = vperm.xlu0 %661, %v631
        %v663 = vpop.permute.xlu0 %662
        %v664 = vperm.slane %v642, %v350
        %v665 = vperm.slane %v645, %v350
        %v666 = vperm.slane %v648, %v350
        %v667 = vperm.slane %v651, %v350
        %v668 = vperm.slane %v654, %v350
        %v669 = vperm.slane %v657, %v350
        %v670 = vperm.slane %v660, %v350
        %v671 = vperm.slane %v663, %v350
        %v672 = vsel %vm497, %v665, %v664
        %v673 = vsel %vm499, %v666, %v672
        %v674 = vsel %vm501, %v667, %v673
        %v675 = vsel %vm503, %v668, %v674
        %v676 = vsel %vm505, %v669, %v675
        %v677 = vsel %vm507, %v670, %v676
        %v678 = vsel %vm509, %v671, %v677
        %v680 = vsel %vm354, %v678, -inf
        %681 = vmax.xlane.f32.xlu0 %v680
        %v682 = vpop.xlane.xlu0 %681
        %v684 = vperm.slane %v682, 0
        %v685 = vperm.slane %v682, 1
        %v686 = vperm.slane %v682, 2
        %v687 = vperm.slane %v682, 3
        %v688 = vperm.slane %v682, 4
        %v689 = vperm.slane %v682, 5
        %v690 = vperm.slane %v682, 6
        %v691 = vperm.slane %v682, 7
        %vm700 = vcmp.eq.f32.partialorder %v624, %v684
        %vm701 = vcmp.eq.f32.partialorder %v625, %v685
        %vm702 = vcmp.eq.f32.partialorder %v626, %v686
        %vm703 = vcmp.eq.f32.partialorder %v627, %v687
        %vm704 = vcmp.eq.f32.partialorder %v628, %v688
        %vm705 = vcmp.eq.f32.partialorder %v629, %v689
        %vm706 = vcmp.eq.f32.partialorder %v630, %v690
        %vm707 = vcmp.eq.f32.partialorder %v631, %v691
        %v708 = vsel %vm700, %v545, 8
        %v709 = vsel %vm701, %v545, 8
        %v710 = vsel %vm702, %v545, 8
        %v711 = vsel %vm703, %v545, 8
        %v712 = vsel %vm704, %v545, 8
        %v713 = vsel %vm705, %v545, 8
        %v714 = vsel %vm706, %v545, 8
        %v715 = vsel %vm707, %v545, 8
        %716 = vset.pattern.permute.xlu0 0
        %717 = vperm.xlu0 %716, %v708
        %v718 = vpop.permute.xlu0 %717
        %719 = vset.pattern.permute.xlu0 0
        %720 = vperm.xlu0 %719, %v709
        %v721 = vpop.permute.xlu0 %720
        %722 = vset.pattern.permute.xlu0 0
        %723 = vperm.xlu0 %722, %v710
        %v724 = vpop.permute.xlu0 %723
        %725 = vset.pattern.permute.xlu0 0
        %726 = vperm.xlu0 %725, %v711
        %v727 = vpop.permute.xlu0 %726
        %728 = vset.pattern.permute.xlu0 0
        %729 = vperm.xlu0 %728, %v712
        %v730 = vpop.permute.xlu0 %729
        %731 = vset.pattern.permute.xlu0 0
        %732 = vperm.xlu0 %731, %v713
        %v733 = vpop.permute.xlu0 %732
        %734 = vset.pattern.permute.xlu0 0
        %735 = vperm.xlu0 %734, %v714
        %v736 = vpop.permute.xlu0 %735
        %737 = vset.pattern.permute.xlu0 0
        %738 = vperm.xlu0 %737, %v715
        %v739 = vpop.permute.xlu0 %738
        %v740 = vperm.slane %v718, %v350
        %v741 = vperm.slane %v721, %v350
        %v742 = vperm.slane %v724, %v350
        %v743 = vperm.slane %v727, %v350
        %v744 = vperm.slane %v730, %v350
        %v745 = vperm.slane %v733, %v350
        %v746 = vperm.slane %v736, %v350
        %v747 = vperm.slane %v739, %v350
        %v748 = vsel %vm497, %v741, %v740
        %v749 = vsel %vm499, %v742, %v748
        %v750 = vsel %vm501, %v743, %v749
        %v751 = vsel %vm503, %v744, %v750
        %v752 = vsel %vm505, %v745, %v751
        %v753 = vsel %vm507, %v746, %v752
        %v754 = vsel %vm509, %v747, %v753
        %v755 = vsel %vm354, %v754, 2147483647
        %v756 = vand.u32 %v755, 65535
        %v757 = vshra.s32 %v755, 16
        %v758 = vcvt.s32.f32 %v756
        %v759 = vcvt.s32.f32 %v757
        %760 = vmin.xlane.f32.xlu0 %v759
        %v761 = vpop.xlane.xlu0 %760
        %vm762 = vcmp.eq.f32.partialorder %v759, %v761
        %v763 = vsel %vm762, %v758, inf
        %764 = vmin.xlane.f32.xlu0 %v763
        %v765 = vpop.xlane.xlu0 %764
        %v766 = vcvt.f32.s32 %v765
        %v767 = vcvt.f32.s32 %v761
        %v768 = vshll.u32 %v767, 16
        %v769 = vadd.s32 %v768, %v766
        %v771 = vperm.slane %v323, 0
        %v772 = vlaneseq
        %v773 = vshrl.u32 %v772, 7
        %775 = vset.pattern.permute.xlu0 %v773
        %776 = vperm.xlu0 %775, %v771
        %v777 = vpop.permute.xlu0 %776
        %v779 = vadd.f32 %v682, %v777
        %780 = vset.pattern.permute.xlu0 2
        %781 = vperm.xlu0 %780, %v369
        %v782 = vpop.permute.xlu0 %781
        %v783 = vperm.slane %v782, 0
        %vm784 = vcmp.eq.s32.totalorder %v783, 1
        %v785 = vsel %vm784, %v779, %v623
        %v786 = vadd.f32 %v785, %v391
        %v787 = vadd.f32 %v785, %v398
        %v788 = vadd.f32 %v785, %v405
        %v789 = vadd.f32 %v785, %v412
        %v790 = vadd.f32 %v785, %v419
        %v791 = vadd.f32 %v785, %v426
        %v792 = vadd.f32 %v785, %v433
        %v793 = vadd.f32 %v785, %v440
        %802 = vset.pattern.permute.xlu0 0
        %803 = vperm.xlu0 %802, %v786
        %v804 = vpop.permute.xlu0 %803
        %805 = vset.pattern.permute.xlu0 0
        %806 = vperm.xlu0 %805, %v787
        %v807 = vpop.permute.xlu0 %806
        %808 = vset.pattern.permute.xlu0 0
        %809 = vperm.xlu0 %808, %v788
        %v810 = vpop.permute.xlu0 %809
        %811 = vset.pattern.permute.xlu0 0
        %812 = vperm.xlu0 %811, %v789
        %v813 = vpop.permute.xlu0 %812
        %814 = vset.pattern.permute.xlu0 0
        %815 = vperm.xlu0 %814, %v790
        %v816 = vpop.permute.xlu0 %815
        %817 = vset.pattern.permute.xlu0 0
        %818 = vperm.xlu0 %817, %v791
        %v819 = vpop.permute.xlu0 %818
        %820 = vset.pattern.permute.xlu0 0
        %821 = vperm.xlu0 %820, %v792
        %v822 = vpop.permute.xlu0 %821
        %823 = vset.pattern.permute.xlu0 0
        %824 = vperm.xlu0 %823, %v793
        %v825 = vpop.permute.xlu0 %824
        %v826 = vperm.slane %v804, %v350
        %v827 = vperm.slane %v807, %v350
        %v828 = vperm.slane %v810, %v350
        %v829 = vperm.slane %v813, %v350
        %v830 = vperm.slane %v816, %v350
        %v831 = vperm.slane %v819, %v350
        %v832 = vperm.slane %v822, %v350
        %v833 = vperm.slane %v825, %v350
        %v834 = vsel %vm497, %v827, %v826
        %v835 = vsel %vm499, %v828, %v834
        %v836 = vsel %vm501, %v829, %v835
        %v837 = vsel %vm503, %v830, %v836
        %v838 = vsel %vm505, %v831, %v837
        %v839 = vsel %vm507, %v832, %v838
        %v840 = vsel %vm509, %v833, %v839
        %v842 = vsel %vm354, %v840, -inf
        %843 = vmax.xlane.f32.xlu0 %v842
        %v844 = vpop.xlane.xlu0 %843
        %v846 = vperm.slane %v844, 0
        %v847 = vperm.slane %v844, 1
        %v848 = vperm.slane %v844, 2
        %v849 = vperm.slane %v844, 3
        %v850 = vperm.slane %v844, 4
        %v851 = vperm.slane %v844, 5
        %v852 = vperm.slane %v844, 6
        %v853 = vperm.slane %v844, 7
        %vm862 = vcmp.eq.f32.partialorder %v786, %v846
        %vm863 = vcmp.eq.f32.partialorder %v787, %v847
        %vm864 = vcmp.eq.f32.partialorder %v788, %v848
        %vm865 = vcmp.eq.f32.partialorder %v789, %v849
        %vm866 = vcmp.eq.f32.partialorder %v790, %v850
        %vm867 = vcmp.eq.f32.partialorder %v791, %v851
        %vm868 = vcmp.eq.f32.partialorder %v792, %v852
        %vm869 = vcmp.eq.f32.partialorder %v793, %v853
        %v870 = vsel %vm862, %v545, 8
        %v871 = vsel %vm863, %v545, 8
        %v872 = vsel %vm864, %v545, 8
        %v873 = vsel %vm865, %v545, 8
        %v874 = vsel %vm866, %v545, 8
        %v875 = vsel %vm867, %v545, 8
        %v876 = vsel %vm868, %v545, 8
        %v877 = vsel %vm869, %v545, 8
        %878 = vset.pattern.permute.xlu0 0
        %879 = vperm.xlu0 %878, %v870
        %v880 = vpop.permute.xlu0 %879
        %881 = vset.pattern.permute.xlu0 0
        %882 = vperm.xlu0 %881, %v871
        %v883 = vpop.permute.xlu0 %882
        %884 = vset.pattern.permute.xlu0 0
        %885 = vperm.xlu0 %884, %v872
        %v886 = vpop.permute.xlu0 %885
        %887 = vset.pattern.permute.xlu0 0
        %888 = vperm.xlu0 %887, %v873
        %v889 = vpop.permute.xlu0 %888
        %890 = vset.pattern.permute.xlu0 0
        %891 = vperm.xlu0 %890, %v874
        %v892 = vpop.permute.xlu0 %891
        %893 = vset.pattern.permute.xlu0 0
        %894 = vperm.xlu0 %893, %v875
        %v895 = vpop.permute.xlu0 %894
        %896 = vset.pattern.permute.xlu0 0
        %897 = vperm.xlu0 %896, %v876
        %v898 = vpop.permute.xlu0 %897
        %899 = vset.pattern.permute.xlu0 0
        %900 = vperm.xlu0 %899, %v877
        %v901 = vpop.permute.xlu0 %900
        %v902 = vperm.slane %v880, %v350
        %v903 = vperm.slane %v883, %v350
        %v904 = vperm.slane %v886, %v350
        %v905 = vperm.slane %v889, %v350
        %v906 = vperm.slane %v892, %v350
        %v907 = vperm.slane %v895, %v350
        %v908 = vperm.slane %v898, %v350
        %v909 = vperm.slane %v901, %v350
        %v910 = vsel %vm497, %v903, %v902
        %v911 = vsel %vm499, %v904, %v910
        %v912 = vsel %vm501, %v905, %v911
        %v913 = vsel %vm503, %v906, %v912
        %v914 = vsel %vm505, %v907, %v913
        %v915 = vsel %vm507, %v908, %v914
        %v916 = vsel %vm509, %v909, %v915
        %v917 = vsel %vm354, %v916, 2147483647
        %v918 = vand.u32 %v917, 65535
        %v919 = vshra.s32 %v917, 16
        %v920 = vcvt.s32.f32 %v918
        %v921 = vcvt.s32.f32 %v919
        %922 = vmin.xlane.f32.xlu0 %v921
        %v923 = vpop.xlane.xlu0 %922
        %vm924 = vcmp.eq.f32.partialorder %v921, %v923
        %v925 = vsel %vm924, %v920, inf
        %926 = vmin.xlane.f32.xlu0 %v925
        %v927 = vpop.xlane.xlu0 %926
        %v928 = vcvt.f32.s32 %v927
        %v929 = vcvt.f32.s32 %v923
        %v930 = vshll.u32 %v929, 16
        %v931 = vadd.s32 %v930, %v928
        %v933 = vperm.slane %v337, 0
        %v934 = vlaneseq
        %v935 = vshrl.u32 %v934, 7
        %937 = vset.pattern.permute.xlu0 %v935
        %938 = vperm.xlu0 %937, %v933
        %v939 = vpop.permute.xlu0 %938
        %v941 = vadd.f32 %v844, %v939
        %942 = vset.pattern.permute.xlu0 3
        %943 = vperm.xlu0 %942, %v369
        %v944 = vpop.permute.xlu0 %943
        %v945 = vperm.slane %v944, 0
        %vm946 = vcmp.eq.s32.totalorder %v945, 1
        %v947 = vsel %vm946, %v941, %v785
        %v948 = vadd.f32 %v947, %v391
        %v949 = vadd.f32 %v947, %v398
        %v950 = vadd.f32 %v947, %v405
        %v951 = vadd.f32 %v947, %v412
        %v952 = vadd.f32 %v947, %v419
        %v953 = vadd.f32 %v947, %v426
        %v954 = vadd.f32 %v947, %v433
        %v955 = vadd.f32 %v947, %v440
        %964 = vset.pattern.permute.xlu0 0
        %965 = vperm.xlu0 %964, %v948
        %v966 = vpop.permute.xlu0 %965
        %967 = vset.pattern.permute.xlu0 0
        %968 = vperm.xlu0 %967, %v949
        %v969 = vpop.permute.xlu0 %968
        %970 = vset.pattern.permute.xlu0 0
        %971 = vperm.xlu0 %970, %v950
        %v972 = vpop.permute.xlu0 %971
        %973 = vset.pattern.permute.xlu0 0
        %974 = vperm.xlu0 %973, %v951
        %v975 = vpop.permute.xlu0 %974
        %976 = vset.pattern.permute.xlu0 0
        %977 = vperm.xlu0 %976, %v952
        %v978 = vpop.permute.xlu0 %977
        %979 = vset.pattern.permute.xlu0 0
        %980 = vperm.xlu0 %979, %v953
        %v981 = vpop.permute.xlu0 %980
        %982 = vset.pattern.permute.xlu0 0
        %983 = vperm.xlu0 %982, %v954
        %v984 = vpop.permute.xlu0 %983
        %985 = vset.pattern.permute.xlu0 0
        %986 = vperm.xlu0 %985, %v955
        %v987 = vpop.permute.xlu0 %986
        %v988 = vperm.slane %v966, %v350
        %v989 = vperm.slane %v969, %v350
        %v990 = vperm.slane %v972, %v350
        %v991 = vperm.slane %v975, %v350
        %v992 = vperm.slane %v978, %v350
        %v993 = vperm.slane %v981, %v350
        %v994 = vperm.slane %v984, %v350
        %v995 = vperm.slane %v987, %v350
        %v996 = vsel %vm497, %v989, %v988
        %v997 = vsel %vm499, %v990, %v996
        %v998 = vsel %vm501, %v991, %v997
        %v999 = vsel %vm503, %v992, %v998
        %v1000 = vsel %vm505, %v993, %v999
        %v1001 = vsel %vm507, %v994, %v1000
        %v1002 = vsel %vm509, %v995, %v1001
        %v1004 = vsel %vm354, %v1002, -inf
        %1005 = vmax.xlane.f32.xlu0 %v1004
        %v1006 = vpop.xlane.xlu0 %1005
        %v1008 = vperm.slane %v1006, 0
        %v1009 = vperm.slane %v1006, 1
        %v1010 = vperm.slane %v1006, 2
        %v1011 = vperm.slane %v1006, 3
        %v1012 = vperm.slane %v1006, 4
        %v1013 = vperm.slane %v1006, 5
        %v1014 = vperm.slane %v1006, 6
        %v1015 = vperm.slane %v1006, 7
        %vm1024 = vcmp.eq.f32.partialorder %v948, %v1008
        %vm1025 = vcmp.eq.f32.partialorder %v949, %v1009
        %vm1026 = vcmp.eq.f32.partialorder %v950, %v1010
        %vm1027 = vcmp.eq.f32.partialorder %v951, %v1011
        %vm1028 = vcmp.eq.f32.partialorder %v952, %v1012
        %vm1029 = vcmp.eq.f32.partialorder %v953, %v1013
        %vm1030 = vcmp.eq.f32.partialorder %v954, %v1014
        %vm1031 = vcmp.eq.f32.partialorder %v955, %v1015
        %v1032 = vsel %vm1024, %v545, 8
        %v1033 = vsel %vm1025, %v545, 8
        %v1034 = vsel %vm1026, %v545, 8
        %v1035 = vsel %vm1027, %v545, 8
        %v1036 = vsel %vm1028, %v545, 8
        %v1037 = vsel %vm1029, %v545, 8
        %v1038 = vsel %vm1030, %v545, 8
        %v1039 = vsel %vm1031, %v545, 8
        %1040 = vset.pattern.permute.xlu0 0
        %1041 = vperm.xlu0 %1040, %v1032
        %v1042 = vpop.permute.xlu0 %1041
        %1043 = vset.pattern.permute.xlu0 0
        %1044 = vperm.xlu0 %1043, %v1033
        %v1045 = vpop.permute.xlu0 %1044
        %1046 = vset.pattern.permute.xlu0 0
        %1047 = vperm.xlu0 %1046, %v1034
        %v1048 = vpop.permute.xlu0 %1047
        %1049 = vset.pattern.permute.xlu0 0
        %1050 = vperm.xlu0 %1049, %v1035
        %v1051 = vpop.permute.xlu0 %1050
        %1052 = vset.pattern.permute.xlu0 0
        %1053 = vperm.xlu0 %1052, %v1036
        %v1054 = vpop.permute.xlu0 %1053
        %1055 = vset.pattern.permute.xlu0 0
        %1056 = vperm.xlu0 %1055, %v1037
        %v1057 = vpop.permute.xlu0 %1056
        %1058 = vset.pattern.permute.xlu0 0
        %1059 = vperm.xlu0 %1058, %v1038
        %v1060 = vpop.permute.xlu0 %1059
        %1061 = vset.pattern.permute.xlu0 0
        %1062 = vperm.xlu0 %1061, %v1039
        %v1063 = vpop.permute.xlu0 %1062
        %v1064 = vperm.slane %v1042, %v350
        %v1065 = vperm.slane %v1045, %v350
        %v1066 = vperm.slane %v1048, %v350
        %v1067 = vperm.slane %v1051, %v350
        %v1068 = vperm.slane %v1054, %v350
        %v1069 = vperm.slane %v1057, %v350
        %v1070 = vperm.slane %v1060, %v350
        %v1071 = vperm.slane %v1063, %v350
        %v1072 = vsel %vm497, %v1065, %v1064
        %v1073 = vsel %vm499, %v1066, %v1072
        %v1074 = vsel %vm501, %v1067, %v1073
        %v1075 = vsel %vm503, %v1068, %v1074
        %v1076 = vsel %vm505, %v1069, %v1075
        %v1077 = vsel %vm507, %v1070, %v1076
        %v1078 = vsel %vm509, %v1071, %v1077
        %v1079 = vsel %vm354, %v1078, 2147483647
        %v1080 = vand.u32 %v1079, 65535
        %v1081 = vshra.s32 %v1079, 16
        %v1082 = vcvt.s32.f32 %v1080
        %v1083 = vcvt.s32.f32 %v1081
        %1084 = vmin.xlane.f32.xlu0 %v1083
        %v1085 = vpop.xlane.xlu0 %1084
        %vm1086 = vcmp.eq.f32.partialorder %v1083, %v1085
        %v1087 = vsel %vm1086, %v1082, inf
        %1088 = vmin.xlane.f32.xlu0 %v1087
        %v1089 = vpop.xlane.xlu0 %1088
        %v1090 = vcvt.f32.s32 %v1089
        %v1091 = vcvt.f32.s32 %v1085
        %v1092 = vshll.u32 %v1091, 16
        %v1093 = vadd.s32 %v1092, %v1090
        %v1095 = vperm.slane %v329, 0
        %v1096 = vlaneseq
        %v1097 = vshrl.u32 %v1096, 7
        %1099 = vset.pattern.permute.xlu0 %v1097
        %1100 = vperm.xlu0 %1099, %v1095
        %v1101 = vpop.permute.xlu0 %1100
        %v1103 = vadd.f32 %v1006, %v1101
        %1104 = vset.pattern.permute.xlu0 4
        %1105 = vperm.xlu0 %1104, %v369
        %v1106 = vpop.permute.xlu0 %1105
        %v1107 = vperm.slane %v1106, 0
        %vm1108 = vcmp.eq.s32.totalorder %v1107, 1
        %v1109 = vsel %vm1108, %v1103, %v947
        %v1110 = vadd.f32 %v1109, %v391
        %v1111 = vadd.f32 %v1109, %v398
        %v1112 = vadd.f32 %v1109, %v405
        %v1113 = vadd.f32 %v1109, %v412
        %v1114 = vadd.f32 %v1109, %v419
        %v1115 = vadd.f32 %v1109, %v426
        %v1116 = vadd.f32 %v1109, %v433
        %v1117 = vadd.f32 %v1109, %v440
        %1126 = vset.pattern.permute.xlu0 0
        %1127 = vperm.xlu0 %1126, %v1110
        %v1128 = vpop.permute.xlu0 %1127
        %1129 = vset.pattern.permute.xlu0 0
        %1130 = vperm.xlu0 %1129, %v1111
        %v1131 = vpop.permute.xlu0 %1130
        %1132 = vset.pattern.permute.xlu0 0
        %1133 = vperm.xlu0 %1132, %v1112
        %v1134 = vpop.permute.xlu0 %1133
        %1135 = vset.pattern.permute.xlu0 0
        %1136 = vperm.xlu0 %1135, %v1113
        %v1137 = vpop.permute.xlu0 %1136
        %1138 = vset.pattern.permute.xlu0 0
        %1139 = vperm.xlu0 %1138, %v1114
        %v1140 = vpop.permute.xlu0 %1139
        %1141 = vset.pattern.permute.xlu0 0
        %1142 = vperm.xlu0 %1141, %v1115
        %v1143 = vpop.permute.xlu0 %1142
        %1144 = vset.pattern.permute.xlu0 0
        %1145 = vperm.xlu0 %1144, %v1116
        %v1146 = vpop.permute.xlu0 %1145
        %1147 = vset.pattern.permute.xlu0 0
        %1148 = vperm.xlu0 %1147, %v1117
        %v1149 = vpop.permute.xlu0 %1148
        %v1150 = vperm.slane %v1128, %v350
        %v1151 = vperm.slane %v1131, %v350
        %v1152 = vperm.slane %v1134, %v350
        %v1153 = vperm.slane %v1137, %v350
        %v1154 = vperm.slane %v1140, %v350
        %v1155 = vperm.slane %v1143, %v350
        %v1156 = vperm.slane %v1146, %v350
        %v1157 = vperm.slane %v1149, %v350
        %v1158 = vsel %vm497, %v1151, %v1150
        %v1159 = vsel %vm499, %v1152, %v1158
        %v1160 = vsel %vm501, %v1153, %v1159
        %v1161 = vsel %vm503, %v1154, %v1160
        %v1162 = vsel %vm505, %v1155, %v1161
        %v1163 = vsel %vm507, %v1156, %v1162
        %v1164 = vsel %vm509, %v1157, %v1163
        %v1166 = vsel %vm354, %v1164, -inf
        %1167 = vmax.xlane.f32.xlu0 %v1166
        %v1168 = vpop.xlane.xlu0 %1167
        %v1170 = vperm.slane %v1168, 0
        %v1171 = vperm.slane %v1168, 1
        %v1172 = vperm.slane %v1168, 2
        %v1173 = vperm.slane %v1168, 3
        %v1174 = vperm.slane %v1168, 4
        %v1175 = vperm.slane %v1168, 5
        %v1176 = vperm.slane %v1168, 6
        %v1177 = vperm.slane %v1168, 7
        %vm1186 = vcmp.eq.f32.partialorder %v1110, %v1170
        %vm1187 = vcmp.eq.f32.partialorder %v1111, %v1171
        %vm1188 = vcmp.eq.f32.partialorder %v1112, %v1172
        %vm1189 = vcmp.eq.f32.partialorder %v1113, %v1173
        %vm1190 = vcmp.eq.f32.partialorder %v1114, %v1174
        %vm1191 = vcmp.eq.f32.partialorder %v1115, %v1175
        %vm1192 = vcmp.eq.f32.partialorder %v1116, %v1176
        %vm1193 = vcmp.eq.f32.partialorder %v1117, %v1177
        %v1194 = vsel %vm1186, %v545, 8
        %v1195 = vsel %vm1187, %v545, 8
        %v1196 = vsel %vm1188, %v545, 8
        %v1197 = vsel %vm1189, %v545, 8
        %v1198 = vsel %vm1190, %v545, 8
        %v1199 = vsel %vm1191, %v545, 8
        %v1200 = vsel %vm1192, %v545, 8
        %v1201 = vsel %vm1193, %v545, 8
        %1202 = vset.pattern.permute.xlu0 0
        %1203 = vperm.xlu0 %1202, %v1194
        %v1204 = vpop.permute.xlu0 %1203
        %1205 = vset.pattern.permute.xlu0 0
        %1206 = vperm.xlu0 %1205, %v1195
        %v1207 = vpop.permute.xlu0 %1206
        %1208 = vset.pattern.permute.xlu0 0
        %1209 = vperm.xlu0 %1208, %v1196
        %v1210 = vpop.permute.xlu0 %1209
        %1211 = vset.pattern.permute.xlu0 0
        %1212 = vperm.xlu0 %1211, %v1197
        %v1213 = vpop.permute.xlu0 %1212
        %1214 = vset.pattern.permute.xlu0 0
        %1215 = vperm.xlu0 %1214, %v1198
        %v1216 = vpop.permute.xlu0 %1215
        %1217 = vset.pattern.permute.xlu0 0
        %1218 = vperm.xlu0 %1217, %v1199
        %v1219 = vpop.permute.xlu0 %1218
        %1220 = vset.pattern.permute.xlu0 0
        %1221 = vperm.xlu0 %1220, %v1200
        %v1222 = vpop.permute.xlu0 %1221
        %1223 = vset.pattern.permute.xlu0 0
        %1224 = vperm.xlu0 %1223, %v1201
        %v1225 = vpop.permute.xlu0 %1224
        %v1226 = vperm.slane %v1204, %v350
        %v1227 = vperm.slane %v1207, %v350
        %v1228 = vperm.slane %v1210, %v350
        %v1229 = vperm.slane %v1213, %v350
        %v1230 = vperm.slane %v1216, %v350
        %v1231 = vperm.slane %v1219, %v350
        %v1232 = vperm.slane %v1222, %v350
        %v1233 = vperm.slane %v1225, %v350
        %v1234 = vsel %vm497, %v1227, %v1226
        %v1235 = vsel %vm499, %v1228, %v1234
        %v1236 = vsel %vm501, %v1229, %v1235
        %v1237 = vsel %vm503, %v1230, %v1236
        %v1238 = vsel %vm505, %v1231, %v1237
        %v1239 = vsel %vm507, %v1232, %v1238
        %v1240 = vsel %vm509, %v1233, %v1239
        %v1241 = vsel %vm354, %v1240, 2147483647
        %v1242 = vand.u32 %v1241, 65535
        %v1243 = vshra.s32 %v1241, 16
        %v1244 = vcvt.s32.f32 %v1242
        %v1245 = vcvt.s32.f32 %v1243
        %1246 = vmin.xlane.f32.xlu0 %v1245
        %v1247 = vpop.xlane.xlu0 %1246
        %vm1248 = vcmp.eq.f32.partialorder %v1245, %v1247
        %v1249 = vsel %vm1248, %v1244, inf
        %1250 = vmin.xlane.f32.xlu0 %v1249
        %v1251 = vpop.xlane.xlu0 %1250
        %v1252 = vcvt.f32.s32 %v1251
        %v1253 = vcvt.f32.s32 %v1247
        %v1254 = vshll.u32 %v1253, 16
        %v1255 = vadd.s32 %v1254, %v1252
        %v1257 = vperm.slane %v339, 0
        %v1258 = vlaneseq
        %v1259 = vshrl.u32 %v1258, 7
        %1261 = vset.pattern.permute.xlu0 %v1259
        %1262 = vperm.xlu0 %1261, %v1257
        %v1263 = vpop.permute.xlu0 %1262
        %v1265 = vadd.f32 %v1168, %v1263
        %1266 = vset.pattern.permute.xlu0 5
        %1267 = vperm.xlu0 %1266, %v369
        %v1268 = vpop.permute.xlu0 %1267
        %v1269 = vperm.slane %v1268, 0
        %vm1270 = vcmp.eq.s32.totalorder %v1269, 1
        %v1271 = vsel %vm1270, %v1265, %v1109
        %v1272 = vadd.f32 %v1271, %v391
        %v1273 = vadd.f32 %v1271, %v398
        %v1274 = vadd.f32 %v1271, %v405
        %v1275 = vadd.f32 %v1271, %v412
        %v1276 = vadd.f32 %v1271, %v419
        %v1277 = vadd.f32 %v1271, %v426
        %v1278 = vadd.f32 %v1271, %v433
        %v1279 = vadd.f32 %v1271, %v440
        %1288 = vset.pattern.permute.xlu0 0
        %1289 = vperm.xlu0 %1288, %v1272
        %v1290 = vpop.permute.xlu0 %1289
        %1291 = vset.pattern.permute.xlu0 0
        %1292 = vperm.xlu0 %1291, %v1273
        %v1293 = vpop.permute.xlu0 %1292
        %1294 = vset.pattern.permute.xlu0 0
        %1295 = vperm.xlu0 %1294, %v1274
        %v1296 = vpop.permute.xlu0 %1295
        %1297 = vset.pattern.permute.xlu0 0
        %1298 = vperm.xlu0 %1297, %v1275
        %v1299 = vpop.permute.xlu0 %1298
        %1300 = vset.pattern.permute.xlu0 0
        %1301 = vperm.xlu0 %1300, %v1276
        %v1302 = vpop.permute.xlu0 %1301
        %1303 = vset.pattern.permute.xlu0 0
        %1304 = vperm.xlu0 %1303, %v1277
        %v1305 = vpop.permute.xlu0 %1304
        %1306 = vset.pattern.permute.xlu0 0
        %1307 = vperm.xlu0 %1306, %v1278
        %v1308 = vpop.permute.xlu0 %1307
        %1309 = vset.pattern.permute.xlu0 0
        %1310 = vperm.xlu0 %1309, %v1279
        %v1311 = vpop.permute.xlu0 %1310
        %v1312 = vperm.slane %v1290, %v350
        %v1313 = vperm.slane %v1293, %v350
        %v1314 = vperm.slane %v1296, %v350
        %v1315 = vperm.slane %v1299, %v350
        %v1316 = vperm.slane %v1302, %v350
        %v1317 = vperm.slane %v1305, %v350
        %v1318 = vperm.slane %v1308, %v350
        %v1319 = vperm.slane %v1311, %v350
        %v1320 = vsel %vm497, %v1313, %v1312
        %v1321 = vsel %vm499, %v1314, %v1320
        %v1322 = vsel %vm501, %v1315, %v1321
        %v1323 = vsel %vm503, %v1316, %v1322
        %v1324 = vsel %vm505, %v1317, %v1323
        %v1325 = vsel %vm507, %v1318, %v1324
        %v1326 = vsel %vm509, %v1319, %v1325
        %v1328 = vsel %vm354, %v1326, -inf
        %1329 = vmax.xlane.f32.xlu0 %v1328
        %v1330 = vpop.xlane.xlu0 %1329
        %v1332 = vperm.slane %v1330, 0
        %v1333 = vperm.slane %v1330, 1
        %v1334 = vperm.slane %v1330, 2
        %v1335 = vperm.slane %v1330, 3
        %v1336 = vperm.slane %v1330, 4
        %v1337 = vperm.slane %v1330, 5
        %v1338 = vperm.slane %v1330, 6
        %v1339 = vperm.slane %v1330, 7
        %vm1348 = vcmp.eq.f32.partialorder %v1272, %v1332
        %vm1349 = vcmp.eq.f32.partialorder %v1273, %v1333
        %vm1350 = vcmp.eq.f32.partialorder %v1274, %v1334
        %vm1351 = vcmp.eq.f32.partialorder %v1275, %v1335
        %vm1352 = vcmp.eq.f32.partialorder %v1276, %v1336
        %vm1353 = vcmp.eq.f32.partialorder %v1277, %v1337
        %vm1354 = vcmp.eq.f32.partialorder %v1278, %v1338
        %vm1355 = vcmp.eq.f32.partialorder %v1279, %v1339
        %v1356 = vsel %vm1348, %v545, 8
        %v1357 = vsel %vm1349, %v545, 8
        %v1358 = vsel %vm1350, %v545, 8
        %v1359 = vsel %vm1351, %v545, 8
        %v1360 = vsel %vm1352, %v545, 8
        %v1361 = vsel %vm1353, %v545, 8
        %v1362 = vsel %vm1354, %v545, 8
        %v1363 = vsel %vm1355, %v545, 8
        %1364 = vset.pattern.permute.xlu0 0
        %1365 = vperm.xlu0 %1364, %v1356
        %v1366 = vpop.permute.xlu0 %1365
        %1367 = vset.pattern.permute.xlu0 0
        %1368 = vperm.xlu0 %1367, %v1357
        %v1369 = vpop.permute.xlu0 %1368
        %1370 = vset.pattern.permute.xlu0 0
        %1371 = vperm.xlu0 %1370, %v1358
        %v1372 = vpop.permute.xlu0 %1371
        %1373 = vset.pattern.permute.xlu0 0
        %1374 = vperm.xlu0 %1373, %v1359
        %v1375 = vpop.permute.xlu0 %1374
        %1376 = vset.pattern.permute.xlu0 0
        %1377 = vperm.xlu0 %1376, %v1360
        %v1378 = vpop.permute.xlu0 %1377
        %1379 = vset.pattern.permute.xlu0 0
        %1380 = vperm.xlu0 %1379, %v1361
        %v1381 = vpop.permute.xlu0 %1380
        %1382 = vset.pattern.permute.xlu0 0
        %1383 = vperm.xlu0 %1382, %v1362
        %v1384 = vpop.permute.xlu0 %1383
        %1385 = vset.pattern.permute.xlu0 0
        %1386 = vperm.xlu0 %1385, %v1363
        %v1387 = vpop.permute.xlu0 %1386
        %v1388 = vperm.slane %v1366, %v350
        %v1389 = vperm.slane %v1369, %v350
        %v1390 = vperm.slane %v1372, %v350
        %v1391 = vperm.slane %v1375, %v350
        %v1392 = vperm.slane %v1378, %v350
        %v1393 = vperm.slane %v1381, %v350
        %v1394 = vperm.slane %v1384, %v350
        %v1395 = vperm.slane %v1387, %v350
        %v1396 = vsel %vm497, %v1389, %v1388
        %v1397 = vsel %vm499, %v1390, %v1396
        %v1398 = vsel %vm501, %v1391, %v1397
        %v1399 = vsel %vm503, %v1392, %v1398
        %v1400 = vsel %vm505, %v1393, %v1399
        %v1401 = vsel %vm507, %v1394, %v1400
        %v1402 = vsel %vm509, %v1395, %v1401
        %v1403 = vsel %vm354, %v1402, 2147483647
        %v1404 = vand.u32 %v1403, 65535
        %v1405 = vshra.s32 %v1403, 16
        %v1406 = vcvt.s32.f32 %v1404
        %v1407 = vcvt.s32.f32 %v1405
        %1408 = vmin.xlane.f32.xlu0 %v1407
        %v1409 = vpop.xlane.xlu0 %1408
        %vm1410 = vcmp.eq.f32.partialorder %v1407, %v1409
        %v1411 = vsel %vm1410, %v1406, inf
        %1412 = vmin.xlane.f32.xlu0 %v1411
        %v1413 = vpop.xlane.xlu0 %1412
        %v1414 = vcvt.f32.s32 %v1413
        %v1415 = vcvt.f32.s32 %v1409
        %v1416 = vshll.u32 %v1415, 16
        %v1417 = vadd.s32 %v1416, %v1414
        %v1419 = vperm.slane %v333, 0
        %v1420 = vlaneseq
        %v1421 = vshrl.u32 %v1420, 7
        %1423 = vset.pattern.permute.xlu0 %v1421
        %1424 = vperm.xlu0 %1423, %v1419
        %v1425 = vpop.permute.xlu0 %1424
        %v1427 = vadd.f32 %v1330, %v1425
        %1428 = vset.pattern.permute.xlu0 6
        %1429 = vperm.xlu0 %1428, %v369
        %v1430 = vpop.permute.xlu0 %1429
        %v1431 = vperm.slane %v1430, 0
        %vm1432 = vcmp.eq.s32.totalorder %v1431, 1
        %v1433 = vsel %vm1432, %v1427, %v1271
        %v1434 = vadd.f32 %v1433, %v391
        %v1435 = vadd.f32 %v1433, %v398
        %v1436 = vadd.f32 %v1433, %v405
        %v1437 = vadd.f32 %v1433, %v412
        %v1438 = vadd.f32 %v1433, %v419
        %v1439 = vadd.f32 %v1433, %v426
        %v1440 = vadd.f32 %v1433, %v433
        %v1441 = vadd.f32 %v1433, %v440
        %1450 = vset.pattern.permute.xlu0 0
        %1451 = vperm.xlu0 %1450, %v1434
        %v1452 = vpop.permute.xlu0 %1451
        %1453 = vset.pattern.permute.xlu0 0
        %1454 = vperm.xlu0 %1453, %v1435
        %v1455 = vpop.permute.xlu0 %1454
        %1456 = vset.pattern.permute.xlu0 0
        %1457 = vperm.xlu0 %1456, %v1436
        %v1458 = vpop.permute.xlu0 %1457
        %1459 = vset.pattern.permute.xlu0 0
        %1460 = vperm.xlu0 %1459, %v1437
        %v1461 = vpop.permute.xlu0 %1460
        %1462 = vset.pattern.permute.xlu0 0
        %1463 = vperm.xlu0 %1462, %v1438
        %v1464 = vpop.permute.xlu0 %1463
        %1465 = vset.pattern.permute.xlu0 0
        %1466 = vperm.xlu0 %1465, %v1439
        %v1467 = vpop.permute.xlu0 %1466
        %1468 = vset.pattern.permute.xlu0 0
        %1469 = vperm.xlu0 %1468, %v1440
        %v1470 = vpop.permute.xlu0 %1469
        %1471 = vset.pattern.permute.xlu0 0
        %1472 = vperm.xlu0 %1471, %v1441
        %v1473 = vpop.permute.xlu0 %1472
        %v1474 = vperm.slane %v1452, %v350
        %v1475 = vperm.slane %v1455, %v350
        %v1476 = vperm.slane %v1458, %v350
        %v1477 = vperm.slane %v1461, %v350
        %v1478 = vperm.slane %v1464, %v350
        %v1479 = vperm.slane %v1467, %v350
        %v1480 = vperm.slane %v1470, %v350
        %v1481 = vperm.slane %v1473, %v350
        %v1482 = vsel %vm497, %v1475, %v1474
        %v1483 = vsel %vm499, %v1476, %v1482
        %v1484 = vsel %vm501, %v1477, %v1483
        %v1485 = vsel %vm503, %v1478, %v1484
        %v1486 = vsel %vm505, %v1479, %v1485
        %v1487 = vsel %vm507, %v1480, %v1486
        %v1488 = vsel %vm509, %v1481, %v1487
        %v1490 = vsel %vm354, %v1488, -inf
        %1491 = vmax.xlane.f32.xlu0 %v1490
        %v1492 = vpop.xlane.xlu0 %1491
        %v1494 = vperm.slane %v1492, 0
        %v1495 = vperm.slane %v1492, 1
        %v1496 = vperm.slane %v1492, 2
        %v1497 = vperm.slane %v1492, 3
        %v1498 = vperm.slane %v1492, 4
        %v1499 = vperm.slane %v1492, 5
        %v1500 = vperm.slane %v1492, 6
        %v1501 = vperm.slane %v1492, 7
        %vm1510 = vcmp.eq.f32.partialorder %v1434, %v1494
        %vm1511 = vcmp.eq.f32.partialorder %v1435, %v1495
        %vm1512 = vcmp.eq.f32.partialorder %v1436, %v1496
        %vm1513 = vcmp.eq.f32.partialorder %v1437, %v1497
        %vm1514 = vcmp.eq.f32.partialorder %v1438, %v1498
        %vm1515 = vcmp.eq.f32.partialorder %v1439, %v1499
        %vm1516 = vcmp.eq.f32.partialorder %v1440, %v1500
        %vm1517 = vcmp.eq.f32.partialorder %v1441, %v1501
        %v1518 = vsel %vm1510, %v545, 8
        %v1519 = vsel %vm1511, %v545, 8
        %v1520 = vsel %vm1512, %v545, 8
        %v1521 = vsel %vm1513, %v545, 8
        %v1522 = vsel %vm1514, %v545, 8
        %v1523 = vsel %vm1515, %v545, 8
        %v1524 = vsel %vm1516, %v545, 8
        %v1525 = vsel %vm1517, %v545, 8
        %1526 = vset.pattern.permute.xlu0 0
        %1527 = vperm.xlu0 %1526, %v1518
        %v1528 = vpop.permute.xlu0 %1527
        %1529 = vset.pattern.permute.xlu0 0
        %1530 = vperm.xlu0 %1529, %v1519
        %v1531 = vpop.permute.xlu0 %1530
        %1532 = vset.pattern.permute.xlu0 0
        %1533 = vperm.xlu0 %1532, %v1520
        %v1534 = vpop.permute.xlu0 %1533
        %1535 = vset.pattern.permute.xlu0 0
        %1536 = vperm.xlu0 %1535, %v1521
        %v1537 = vpop.permute.xlu0 %1536
        %1538 = vset.pattern.permute.xlu0 0
        %1539 = vperm.xlu0 %1538, %v1522
        %v1540 = vpop.permute.xlu0 %1539
        %1541 = vset.pattern.permute.xlu0 0
        %1542 = vperm.xlu0 %1541, %v1523
        %v1543 = vpop.permute.xlu0 %1542
        %1544 = vset.pattern.permute.xlu0 0
        %1545 = vperm.xlu0 %1544, %v1524
        %v1546 = vpop.permute.xlu0 %1545
        %1547 = vset.pattern.permute.xlu0 0
        %1548 = vperm.xlu0 %1547, %v1525
        %v1549 = vpop.permute.xlu0 %1548
        %v1550 = vperm.slane %v1528, %v350
        %v1551 = vperm.slane %v1531, %v350
        %v1552 = vperm.slane %v1534, %v350
        %v1553 = vperm.slane %v1537, %v350
        %v1554 = vperm.slane %v1540, %v350
        %v1555 = vperm.slane %v1543, %v350
        %v1556 = vperm.slane %v1546, %v350
        %v1557 = vperm.slane %v1549, %v350
        %v1558 = vsel %vm497, %v1551, %v1550
        %v1559 = vsel %vm499, %v1552, %v1558
        %v1560 = vsel %vm501, %v1553, %v1559
        %v1561 = vsel %vm503, %v1554, %v1560
        %v1562 = vsel %vm505, %v1555, %v1561
        %v1563 = vsel %vm507, %v1556, %v1562
        %v1564 = vsel %vm509, %v1557, %v1563
        %v1565 = vsel %vm354, %v1564, 2147483647
        %v1566 = vand.u32 %v1565, 65535
        %v1567 = vshra.s32 %v1565, 16
        %v1568 = vcvt.s32.f32 %v1566
        %v1569 = vcvt.s32.f32 %v1567
        %1570 = vmin.xlane.f32.xlu0 %v1569
        %v1571 = vpop.xlane.xlu0 %1570
        %vm1572 = vcmp.eq.f32.partialorder %v1569, %v1571
        %v1573 = vsel %vm1572, %v1568, inf
        %1574 = vmin.xlane.f32.xlu0 %v1573
        %v1575 = vpop.xlane.xlu0 %1574
        %v1576 = vcvt.f32.s32 %v1575
        %v1577 = vcvt.f32.s32 %v1571
        %v1578 = vshll.u32 %v1577, 16
        %v1579 = vadd.s32 %v1578, %v1576
        %v1581 = vperm.slane %v341, 0
        %v1582 = vlaneseq
        %v1583 = vshrl.u32 %v1582, 7
        %1585 = vset.pattern.permute.xlu0 %v1583
        %1586 = vperm.xlu0 %1585, %v1581
        %v1587 = vpop.permute.xlu0 %1586
        %v1589 = vadd.f32 %v1492, %v1587
        %1590 = vset.pattern.permute.xlu0 7
        %1591 = vperm.xlu0 %1590, %v369
        %v1592 = vpop.permute.xlu0 %1591
        %v1593 = vperm.slane %v1592, 0
        %vm1594 = vcmp.eq.s32.totalorder %v1593, 1
        %v1595 = vsel %vm1594, %v1589, %v1433
        %v1596 = vadd.f32 %v1595, %v440
        %1598 = vset.pattern.permute.xlu0 0
        %1599 = vperm.xlu0 %1598, %v1596
        %v1600 = vpop.permute.xlu0 %1599
        %v1601 = vperm.slane %v1600, %v350
        %1603 = vst.msk [vmem:[%s256] sm:$0x1] %vm343, %v1601
        %vm1604 = vcmask 7168
        %v1605 = vsel %vm1604, %v1596, -inf
        %v1606 = vrot.slane %v1605, 4
        %v1607 = vmax.f32 %v1605, %v1606
        %v1608 = vrot.slane %v1607, 2
        %v1609 = vmax.f32 %v1607, %v1608
        %v1610 = vrot.slane %v1609, 1
        %v1611 = vmax.f32 %v1609, %v1610
        %1613 = vset.pattern.permute.xlu0 0
        %1614 = vperm.xlu0 %1613, %v1611
        %v1615 = vpop.permute.xlu0 %1614
        %vm1617 = vcmp.eq.f32.partialorder %v1596, %v1615
        %v1618 = vsel %vm1617, %v545, 8
        %v1619 = vsel %vm1604, %v1618, 2147483647
        %v1620 = vrot.slane %v1619, 4
        %vm1621 = vcmp.lt.s32.totalorder %v1619, %v1620
        %v1622 = vsel %vm1621, %v1619, %v1620
        %v1623 = vrot.slane %v1622, 2
        %vm1624 = vcmp.lt.s32.totalorder %v1622, %v1623
        %v1625 = vsel %vm1624, %v1622, %v1623
        %v1626 = vrot.slane %v1625, 1
        %vm1627 = vcmp.lt.s32.totalorder %v1625, %v1626
        %v1628 = vsel %vm1627, %v1625, %v1626
        %vm1629 = vcmp.eq.s32.totalorder %v350, 7
        %vm1630 = vcmp.gt.s32.totalorder %v347, 7
        %v1631 = vsel %vm1630, 1, 0
        %vm1632 = vcmp.eq.s32.totalorder %v1631, 1
        %vm1633 = vmand %vm1629, %vm1632
        %1634 = vset.pattern.permute.xlu0 0
        %1635 = vperm.xlu0 %1634, %v1628
        %v1636 = vpop.permute.xlu0 %1635
        %v1637 = vsel %vm1633, %v1636, 0
        %vm1638 = vcmp.eq.s32.totalorder %v350, %v1636
        %v1639 = vperm.slane %v1579, %v350
        %v1640 = vsel %vm1638, %v1639, 0
        %v1641 = vsel %vm343, %v1640, 0
        %v1642 = vand.u32 %v1641, 65535
        %v1643 = vshrl.u32 %v1641, 16
        %v1644 = vcvt.s32.f32 %v1642
        %v1645 = vcvt.s32.f32 %v1643
        %1646 = vadd.xlane.f32.xlu0 %v1644
        %v1647 = vpop.xlane.xlu0 %1646
        %1648 = vadd.xlane.f32.xlu0 %v1645
        %v1649 = vpop.xlane.xlu0 %1648
        %v1650 = vcvt.f32.s32 %v1647
        %v1651 = vcvt.f32.s32 %v1649
        %v1652 = vshll.u32 %v1651, 16
        %v1653 = vadd.s32 %v1652, %v1650
        %v1654 = vsub.s32 %v347, 2
        %vm1655 = vcmp.ge.s32.totalorder %v1654, 6
        %v1656 = vsel %vm1655, %v1653, %v1628
        %vm1657 = vcmp.gt.s32.totalorder %v347, 6
        %v1658 = vsel %vm1657, 1, 0
        %vm1659 = vcmp.eq.s32.totalorder %v1658, 1
        %vm1660 = vmand %vm351, %vm1659
        %1661 = vset.pattern.permute.xlu0 0
        %1662 = vperm.xlu0 %1661, %v1656
        %v1663 = vpop.permute.xlu0 %1662
        %v1664 = vsel %vm1660, %v1663, %v1637
        %vm1665 = vcmp.eq.s32.totalorder %v350, %v1663
        %v1666 = vperm.slane %v1417, %v350
        %v1667 = vsel %vm1665, %v1666, 0
        %v1668 = vsel %vm343, %v1667, 0
        %v1669 = vand.u32 %v1668, 65535
        %v1670 = vshrl.u32 %v1668, 16
        %v1671 = vcvt.s32.f32 %v1669
        %v1672 = vcvt.s32.f32 %v1670
        %1673 = vadd.xlane.f32.xlu0 %v1671
        %v1674 = vpop.xlane.xlu0 %1673
        %1675 = vadd.xlane.f32.xlu0 %v1672
        %v1676 = vpop.xlane.xlu0 %1675
        %v1677 = vcvt.f32.s32 %v1674
        %v1678 = vcvt.f32.s32 %v1676
        %v1679 = vshll.u32 %v1678, 16
        %v1680 = vadd.s32 %v1679, %v1677
        %vm1681 = vcmp.ge.s32.totalorder %v1654, 5
        %v1682 = vsel %vm1681, %v1680, %v1656
        %vm1683 = vcmp.eq.s32.totalorder %v350, 5
        %vm1684 = vcmp.gt.s32.totalorder %v347, 5
        %v1685 = vsel %vm1684, 1, 0
        %vm1686 = vcmp.eq.s32.totalorder %v1685, 1
        %vm1687 = vmand %vm1683, %vm1686
        %1688 = vset.pattern.permute.xlu0 0
        %1689 = vperm.xlu0 %1688, %v1682
        %v1690 = vpop.permute.xlu0 %1689
        %v1691 = vsel %vm1687, %v1690, %v1664
        %vm1692 = vcmp.eq.s32.totalorder %v350, %v1690
        %v1693 = vperm.slane %v1255, %v350
        %v1694 = vsel %vm1692, %v1693, 0
        %v1695 = vsel %vm343, %v1694, 0
        %v1696 = vand.u32 %v1695, 65535
        %v1697 = vshrl.u32 %v1695, 16
        %v1698 = vcvt.s32.f32 %v1696
        %v1699 = vcvt.s32.f32 %v1697
        %1700 = vadd.xlane.f32.xlu0 %v1698
        %v1701 = vpop.xlane.xlu0 %1700
        %1702 = vadd.xlane.f32.xlu0 %v1699
        %v1703 = vpop.xlane.xlu0 %1702
        %v1704 = vcvt.f32.s32 %v1701
        %v1705 = vcvt.f32.s32 %v1703
        %v1706 = vshll.u32 %v1705, 16
        %v1707 = vadd.s32 %v1706, %v1704
        %vm1708 = vcmp.ge.s32.totalorder %v1654, 4
        %v1709 = vsel %vm1708, %v1707, %v1682
        %vm1710 = vcmp.eq.s32.totalorder %v350, 4
        %vm1711 = vcmp.gt.s32.totalorder %v347, 4
        %v1712 = vsel %vm1711, 1, 0
        %vm1713 = vcmp.eq.s32.totalorder %v1712, 1
        %vm1714 = vmand %vm1710, %vm1713
        %1715 = vset.pattern.permute.xlu0 0
        %1716 = vperm.xlu0 %1715, %v1709
        %v1717 = vpop.permute.xlu0 %1716
        %v1718 = vsel %vm1714, %v1717, %v1691
        %vm1719 = vcmp.eq.s32.totalorder %v350, %v1717
        %v1720 = vperm.slane %v1093, %v350
        %v1721 = vsel %vm1719, %v1720, 0
        %v1722 = vsel %vm343, %v1721, 0
        %v1723 = vand.u32 %v1722, 65535
        %v1724 = vshrl.u32 %v1722, 16
        %v1725 = vcvt.s32.f32 %v1723
        %v1726 = vcvt.s32.f32 %v1724
        %1727 = vadd.xlane.f32.xlu0 %v1725
        %v1728 = vpop.xlane.xlu0 %1727
        %1729 = vadd.xlane.f32.xlu0 %v1726
        %v1730 = vpop.xlane.xlu0 %1729
        %v1731 = vcvt.f32.s32 %v1728
        %v1732 = vcvt.f32.s32 %v1730
        %v1733 = vshll.u32 %v1732, 16
        %v1734 = vadd.s32 %v1733, %v1731
        %vm1735 = vcmp.ge.s32.totalorder %v1654, 3
        %v1736 = vsel %vm1735, %v1734, %v1709
        %vm1737 = vcmp.eq.s32.totalorder %v350, 3
        %vm1738 = vcmp.gt.s32.totalorder %v347, 3
        %v1739 = vsel %vm1738, 1, 0
        %vm1740 = vcmp.eq.s32.totalorder %v1739, 1
        %vm1741 = vmand %vm1737, %vm1740
        %1742 = vset.pattern.permute.xlu0 0
        %1743 = vperm.xlu0 %1742, %v1736
        %v1744 = vpop.permute.xlu0 %1743
        %v1745 = vsel %vm1741, %v1744, %v1718
        %vm1746 = vcmp.eq.s32.totalorder %v350, %v1744
        %v1747 = vperm.slane %v931, %v350
        %v1748 = vsel %vm1746, %v1747, 0
        %v1749 = vsel %vm343, %v1748, 0
        %v1750 = vand.u32 %v1749, 65535
        %v1751 = vshrl.u32 %v1749, 16
        %v1752 = vcvt.s32.f32 %v1750
        %v1753 = vcvt.s32.f32 %v1751
        %1754 = vadd.xlane.f32.xlu0 %v1752
        %v1755 = vpop.xlane.xlu0 %1754
        %1756 = vadd.xlane.f32.xlu0 %v1753
        %v1757 = vpop.xlane.xlu0 %1756
        %v1758 = vcvt.f32.s32 %v1755
        %v1759 = vcvt.f32.s32 %v1757
        %v1760 = vshll.u32 %v1759, 16
        %v1761 = vadd.s32 %v1760, %v1758
        %vm1762 = vcmp.ge.s32.totalorder %v1654, 2
        %v1763 = vsel %vm1762, %v1761, %v1736
        %vm1764 = vcmp.eq.s32.totalorder %v350, 2
        %vm1765 = vcmp.gt.s32.totalorder %v347, 2
        %v1766 = vsel %vm1765, 1, 0
        %vm1767 = vcmp.eq.s32.totalorder %v1766, 1
        %vm1768 = vmand %vm1764, %vm1767
        %1769 = vset.pattern.permute.xlu0 0
        %1770 = vperm.xlu0 %1769, %v1763
        %v1771 = vpop.permute.xlu0 %1770
        %v1772 = vsel %vm1768, %v1771, %v1745
        %vm1773 = vcmp.eq.s32.totalorder %v350, %v1771
        %v1774 = vperm.slane %v769, %v350
        %v1775 = vsel %vm1773, %v1774, 0
        %v1776 = vsel %vm343, %v1775, 0
        %v1777 = vand.u32 %v1776, 65535
        %v1778 = vshrl.u32 %v1776, 16
        %v1779 = vcvt.s32.f32 %v1777
        %v1780 = vcvt.s32.f32 %v1778
        %1781 = vadd.xlane.f32.xlu0 %v1779
        %v1782 = vpop.xlane.xlu0 %1781
        %1783 = vadd.xlane.f32.xlu0 %v1780
        %v1784 = vpop.xlane.xlu0 %1783
        %v1785 = vcvt.f32.s32 %v1782
        %v1786 = vcvt.f32.s32 %v1784
        %v1787 = vshll.u32 %v1786, 16
        %v1788 = vadd.s32 %v1787, %v1785
        %vm1789 = vcmp.ge.s32.totalorder %v1654, 1
        %v1790 = vsel %vm1789, %v1788, %v1763
        %vm1791 = vcmp.eq.s32.totalorder %v350, 1
        %vm1792 = vcmp.gt.s32.totalorder %v347, 1
        %v1793 = vsel %vm1792, 1, 0
        %vm1794 = vcmp.eq.s32.totalorder %v1793, 1
        %vm1795 = vmand %vm1791, %vm1794
        %1796 = vset.pattern.permute.xlu0 0
        %1797 = vperm.xlu0 %1796, %v1790
        %v1798 = vpop.permute.xlu0 %1797
        %v1799 = vsel %vm1795, %v1798, %v1772
        %vm1800 = vcmp.eq.s32.totalorder %v350, %v1798
        %v1801 = vperm.slane %v607, %v350
        %v1802 = vsel %vm1800, %v1801, 0
        %v1803 = vsel %vm343, %v1802, 0
        %v1804 = vand.u32 %v1803, 65535
        %v1805 = vshrl.u32 %v1803, 16
        %v1806 = vcvt.s32.f32 %v1804
        %v1807 = vcvt.s32.f32 %v1805
        %1808 = vadd.xlane.f32.xlu0 %v1806
        %v1809 = vpop.xlane.xlu0 %1808
        %1810 = vadd.xlane.f32.xlu0 %v1807
        %v1811 = vpop.xlane.xlu0 %1810
        %v1812 = vcvt.f32.s32 %v1809
        %v1813 = vcvt.f32.s32 %v1811
        %v1814 = vshll.u32 %v1813, 16
        %v1815 = vadd.s32 %v1814, %v1812
        %vm1816 = vcmp.ge.s32.totalorder %v1654, 0
        %v1817 = vsel %vm1816, %v1815, %v1790
        %vm1818 = vcmp.eq.s32.totalorder %v350, 0
        %vm1819 = vcmp.gt.s32.totalorder %v347, 0
        %v1820 = vsel %vm1819, 1, 0
        %vm1821 = vcmp.eq.s32.totalorder %v1820, 1
        %vm1822 = vmand %vm1818, %vm1821
        %1823 = vset.pattern.permute.xlu0 0
        %1824 = vperm.xlu0 %1823, %v1817
        %v1825 = vpop.permute.xlu0 %1824
        %v1826 = vsel %vm1822, %v1825, %v1799
        %1827 = vst.msk [vmem:[%s262] sm:$0x1] %vm343, %v1826
        %s1828 = sand.u32 %s147, 1
        %s1829 = scalar_lea.sflag [#allocation3], %s1828
        %s1830 = sand.u32 %s147, 1
        %s1831 = scalar_lea.vmem [#allocation2], %s1830
        %s1832 = sand.u32 %s173, 1
        %s1833 = scalar_lea.sflag [#allocation5], %s1832
        %s1834 = sand.u32 %s173, 1
        %s1835 = scalar_lea.vmem [#allocation4], %s1834
        // Predicated region
        $region41: #{output_trans_forward.1} parent=39 // pred_check
          %p1836 = pneg %p157
        $region42: #{output_trans_forward.1} parent=39 // pred_check_branch
          %1838 = sbr.rel (%p1836) target = $region44
        $region43: #{output_trans_forward.1} parent=39 // pred_region
          %1840 = vsyncadd %s1829, 0
          %s1841 = scalar_lea.hbm %s5, %s24
          %s1843 = sshll.u32 %s1831, 4
          %s1844 = int_to_ptr.vmem [resolvable:$true] %s1843
          %s1845 = sshll.u32 %s1841, 4
          %s1846 = int_to_ptr.hbm [resolvable:$true] %s1845
          %1848 = dma.vmem_to_hbm [thread:$0]  %s1844, 16, %s1846, %s1829
        $region44: #{output_trans_forward.1} parent=39 // pred_fallthru
          _
        // Predicated region
        $region45: #{output_trans_forward.1} parent=39 // pred_check
          %p1849 = pneg %p183
        $region46: #{output_trans_forward.1} parent=39 // pred_check_branch
          %1851 = sbr.rel (%p1849) target = $region48
        $region47: #{output_trans_forward.1} parent=39 // pred_region
          %1853 = vsyncadd %s1833, 0
          %s1854 = scalar_lea.hbm %s6, %s24
          %s1856 = sshll.u32 %s1835, 4
          %s1857 = int_to_ptr.vmem [resolvable:$true] %s1856
          %s1858 = sshll.u32 %s1854, 4
          %s1859 = int_to_ptr.hbm [resolvable:$true] %s1858
          %1861 = dma.vmem_to_hbm [thread:$0]  %s1857, 16, %s1859, %s1833
        $region48: #{output_trans_forward.1} parent=39 // pred_fallthru
          _
      $region40: #{output_trans_forward.1} parent=5 // pred_fallthru
        _
      %p1862 = scmp.le.s32.totalorder 2, %s19
      // Predicated region
      $region49: #{output_trans_forward.1} parent=5 // pred_check
        %p1863 = pneg %p1862
      $region50: #{output_trans_forward.1} parent=5 // pred_check_branch
        %1865 = sbr.rel (%p1863) target = $region52
      $region51: #{output_trans_forward.1} parent=5 // pred_region
        %s1866 = ssub.s32 %s19, 2
        // Predicated region
        $region53: #{output_trans_forward.1} parent=51 // pred_check
          %p1867 = pneg %p163
        $region54: #{output_trans_forward.1} parent=51 // pred_check_branch
          %1869 = sbr.rel (%p1867) target = $region56
        $region55: #{output_trans_forward.1} parent=51 // pred_region
          %s1870 = sand.u32 %s148, 1
          %s1871 = scalar_lea.sflag [#allocation3], %s1870
          %s1872 = sand.u32 %s148, 1
          %s1873 = scalar_lea.vmem [#allocation2], %s1872
          %1875 = dma.done %s1871, 16
        $region56: #{output_trans_forward.1} parent=51 // pred_fallthru
          _
        // Predicated region
        $region57: #{output_trans_forward.1} parent=51 // pred_check
          %p1876 = pneg %p189
        $region58: #{output_trans_forward.1} parent=51 // pred_check_branch
          %1878 = sbr.rel (%p1876) target = $region60
        $region59: #{output_trans_forward.1} parent=51 // pred_region
          %s1879 = sand.u32 %s174, 1
          %s1880 = scalar_lea.sflag [#allocation5], %s1879
          %s1881 = sand.u32 %s174, 1
          %s1882 = scalar_lea.vmem [#allocation4], %s1881
          %1884 = dma.done %s1880, 16
        $region60: #{output_trans_forward.1} parent=51 // pred_fallthru
          _
      $region52: #{output_trans_forward.1} parent=5 // pred_fallthru
        _
    $region6: #{output_trans_forward.1} parent=1 // loop_footer
      %s23 = sadd.s32 1, %s19
    $region7: #{output_trans_forward.1} parent=1 // loop_footer_branch
      %18 = sbr.rel target = $region3
    $region8: #{output_trans_forward.1} parent=1 // loop_exit
      _
    %1885 = vsyncpa [#allocation3], 1
    %s1886 = scalar_lea.sflag [#allocation3], 1
    %1887 = vsyncpa %s1886, 1
    %1888 = vsyncpa [#allocation5], 1
    %s1889 = scalar_lea.sflag [#allocation5], 1
    %1890 = vsyncpa %s1889, 1

</llo_original>
